<compile_context>
chip_gen: v5e
topology: v5e:2x2
jax: 0.10.0
libtpu: 0.0.40
codegen_flags: <defaults>
</compile_context>

<pallas_src>
import jax
import jax.numpy as jnp
from jax.experimental import pallas as pl
from jax.experimental.pallas import tpu as pltpu

HEADS = 4
HEAD_DIM = 128
ACTION_DIM = 2
NEG_SLOPE = 0.2                       # GATConv default LeakyReLU slope
LOG_STD_MIN, LOG_STD_MAX = -20.0, 2.0
MASK_NEG = -1e30


def _vmem_spec():
    # Whole-array, resident in VMEM; no grid -> no pipeline prologue/epilogue machinery.
    return pl.BlockSpec(memory_space=pltpu.MemorySpace.VMEM)


# ----------------------------- fused kernel -----------------------------

def fused_actor_critic_kernel(
        x_ref, mask_ref, sel_ref,
        wgat_ref, att_ref,
        aw1_ref, aw2_ref, aw3_ref,
        obs_ref, cw1_ref, cw2_ref, cw3_ref,
        bias_ref,
        actor_ref, value_ref,
        emb_ref):
    f32 = jnp.float32
    bf16 = jnp.bfloat16

    # static shape-derived constants
    gat_out = wgat_ref.shape[1]                   # 512
    heads = att_ref.shape[1] // 2                 # 4
    head_dim = gat_out // heads                   # 128
    hid_a = aw1_ref.shape[1]
    hid_c = cw1_ref.shape[1]
    a_out = aw3_ref.shape[1]                      # 2*action_dim
    action_dim = a_out // 2

    # ---- unpack the fused bias bundle (static offsets, one [1, total] row) ----
    o = 0
    b_gat = bias_ref[:, o:o + gat_out]; o += gat_out
    ab1 = bias_ref[:, o:o + hid_a]; o += hid_a
    ab2 = bias_ref[:, o:o + hid_a]; o += hid_a
    ab3 = bias_ref[:, o:o + a_out]; o += a_out
    cb1 = bias_ref[:, o:o + hid_c]; o += hid_c
    cb2 = bias_ref[:, o:o + hid_c]; o += hid_c
    cb3 = bias_ref[:, o:o + 1]

    # ---- GATConv(5, 128, heads=4, concat=True): one fused bf16 node projection ----
    hf_f32 = jnp.dot(x_ref[...], wgat_ref[...], preferred_element_type=f32)   # [N, 512] f32
    hf = hf_f32.astype(bf16)                                                   # bf16 copy for MXU

    # ---- all-head attention coefficients in ONE MXU matmul ----
    # att_ref columns [0:H] hold att_dst (block-diagonal per head), [H:2H] hold att_src.
    alphas = jnp.dot(hf, att_ref[...], preferred_element_type=f32)             # [N, 2H] f32
    alpha_dst = alphas[:, :heads]                                              # [N, H] columns
    alpha_src_t = alphas[:, heads:].T                                          # [H, N] one transpose

    mask = mask_ref[...].astype(f32)              # [N, N] additive mask: 0 (edge) / -1e30

    for h in range(heads):                        # static unroll, HEADS = 4
        # scores[i, j] = alpha_dst[i] + alpha_src[j]
        scores = alpha_dst[:, h:h + 1] + alpha_src_t[h:h + 1, :]               # [N, N]
        scores = jnp.maximum(scores, NEG_SLOPE * scores)                       # LeakyReLU(0.2)
        scores = scores + mask                                                 # mask non-edges
        scores = scores - jnp.max(scores, axis=-1, keepdims=True)
        p = jnp.exp(scores)
        denom = jnp.sum(p, axis=-1, keepdims=True)                             # >= 1 (self-loop)
        attn = (p * pl.reciprocal(denom, approx=True)).astype(bf16)            # softmax over srcs
        emb_ref[:, h * head_dim:(h + 1) * head_dim] = jnp.dot(
            attn, hf[:, h * head_dim:(h + 1) * head_dim],
            preferred_element_type=f32).astype(bf16)                           # [N, D]

    # ---- team-node gather: one-hot selection matmul; GAT bias added only to gathered rows ----
    team_emb = jnp.dot(sel_ref[...], emb_ref[...], preferred_element_type=f32) + b_gat   # [T, 512]

    # ---- actor MLP + distribution head ----
    h1 = jnp.maximum(
        jnp.dot(team_emb.astype(bf16), aw1_ref[...], preferred_element_type=f32) + ab1, 0.0)
    h2 = jnp.maximum(
        jnp.dot(h1.astype(bf16), aw2_ref[...], preferred_element_type=f32) + ab2, 0.0)
    out = jnp.dot(h2.astype(bf16), aw3_ref[...], preferred_element_type=f32) + ab3       # [T, 2A]
    mean = out[:, :action_dim]
    log_std = jnp.clip(out[:, action_dim:], LOG_STD_MIN, LOG_STD_MAX)
    actor_ref[...] = jnp.concatenate([mean, jnp.exp(log_std)], axis=-1)        # [T, 2A] lane-dense

    # ---- critic MLP on the raw observation ----
    c1 = jnp.maximum(
        jnp.dot(obs_ref[...], cw1_ref[...], preferred_element_type=f32) + cb1, 0.0)
    c2 = jnp.maximum(
        jnp.dot(c1.astype(bf16), cw2_ref[...], preferred_element_type=f32) + cb2, 0.0)
    value_ref[...] = jnp.dot(c2.astype(bf16), cw3_ref[...], preferred_element_type=f32) + cb3


# ----------------------------- host-side param packing -----------------------------

def pack_params(raw):
    """Convert f32 module params to the kernel-ready layout:
       bf16 weights, fused block-diagonal attention matrix [512, 2H], one packed f32 bias row."""
    heads, head_dim = raw["att_src"].shape
    gat_out = heads * head_dim
    att = jnp.zeros((gat_out, 2 * heads), jnp.float32)
    for h in range(heads):
        att = att.at[h * head_dim:(h + 1) * head_dim, h].set(raw["att_dst"][h])
        att = att.at[h * head_dim:(h + 1) * head_dim, heads + h].set(raw["att_src"][h])
    bias = jnp.concatenate(
        [raw["b_gat"], raw["ab1"], raw["ab2"], raw["ab3"],
         raw["cb1"], raw["cb2"], raw["cb3"]], axis=-1).astype(jnp.float32)     # [1, total]
    bf = lambda a: a.astype(jnp.bfloat16)
    return dict(
        w_gat=bf(raw["w_gat"]), att=bf(att),
        aw1=bf(raw["aw1"]), aw2=bf(raw["aw2"]), aw3=bf(raw["aw3"]),
        cw1=bf(raw["cw1"]), cw2=bf(raw["cw2"]), cw3=bf(raw["cw3"]),
        bias=bias)


# ----------------------------- wrapper -----------------------------

def actor_critic_gnn_forward(kparams, graph_x, adj, observation, team_idx, batch_size=1):
    """Returns (mean, std, value); Normal(mean, std) is represented by the (mean, std) pair.
    For best MXU utilization, batch rollouts so the team / observation leading dims are >= 128."""
    n, f_in = graph_x.shape
    t = int(team_idx.shape[0])
    b, in_dim = observation.shape
    gat_out = kparams["w_gat"].shape[1]
    heads = kparams["att"].shape[1] // 2
    head_dim = gat_out // heads
    hid = kparams["aw1"].shape[1]
    a_out = kparams["aw3"].shape[1]
    action_dim = a_out // 2

    # Row-gather as a bf16 one-hot selection matmul; adj as an additive bf16 mask.
    sel = jax.nn.one_hot(team_idx, n, dtype=jnp.bfloat16)                      # [T, N]
    mask = jnp.where(adj > 0, 0.0, MASK_NEG).astype(jnp.bfloat16)              # [N, N]
    x_bf = graph_x.astype(jnp.bfloat16)
    obs_bf = observation.astype(jnp.bfloat16)

    ins = [x_bf, mask, sel,
           kparams["w_gat"], kparams["att"],
           kparams["aw1"], kparams["aw2"], kparams["aw3"],
           obs_bf, kparams["cw1"], kparams["cw2"], kparams["cw3"],
           kparams["bias"]]
    out_shapes = (jax.ShapeDtypeStruct((t, a_out), jnp.float32),
                  jax.ShapeDtypeStruct((b, 1), jnp.float32))

    flops = 2.0 * (n * f_in * gat_out            # node projection
                   + n * gat_out * 2 * heads     # attention coefficients
                   + heads * n * n * head_dim    # attn @ hf per head
                   + t * n * gat_out             # one-hot gather
                   + t * gat_out * hid + t * hid * hid + t * hid * a_out     # actor MLP
                   + b * in_dim * hid + b * hid * hid + b * hid)             # critic MLP
    transcendentals = float(heads * n * n + heads * n + t * action_dim)
    out_bytes = (t * a_out + b) * 4
    bytes_accessed = sum(int(a.size) * int(a.dtype.itemsize) for a in ins) + out_bytes

    # TODO(synk): once the graph grows (N >~ 1024 on v5e, ~1500 on v6e, earlier on v7x's 64 MiB
    # VMEM), add a dst-row grid axis (adj BlockSpec (tile, N), per-tile emb writeback, gather+MLPs
    # under pl.when on the last step), mark it "parallel" for the v7x second TensorCore, and raise
    # vmem_limit_bytes accordingly.
    actor_out, value = pl.pallas_call(
        fused_actor_critic_kernel,
        in_specs=[_vmem_spec() for _ in ins],
        out_specs=(_vmem_spec(), _vmem_spec()),
        out_shape=out_shapes,
        scratch_shapes=[pltpu.VMEM((n, gat_out), jnp.bfloat16)],    # per-head emb writeback slab
        compiler_params=pltpu.CompilerParams(vmem_limit_bytes=32 * 1024 * 1024),
        cost_estimate=pl.CostEstimate(flops=int(flops),
                                      transcendentals=int(transcendentals),
                                      bytes_accessed=int(bytes_accessed)),
    )(*ins)

    mean = actor_out[:, :action_dim]
    std = actor_out[:, action_dim:]
    if batch_size > 1:
        team_size = t // batch_size
        mean = mean.reshape(batch_size, team_size, action_dim)
        std = std.reshape(batch_size, team_size, action_dim)
    return mean, std, value


# ----------------------------- pure-JAX f32 reference (for sanity check) -----------------------------

def reference_forward(raw, graph_x, adj, observation, team_idx):
    heads, head_dim = raw["att_src"].shape
    hf = graph_x @ raw["w_gat"]
    outs = []
    for h in range(heads):
        hf_h = hf[:, h * head_dim:(h + 1) * head_dim]
        a_src = jnp.sum(hf_h * raw["att_src"][h], axis=-1)
        a_dst = jnp.sum(hf_h * raw["att_dst"][h], axis=-1)
        s = a_dst[:, None] + a_src[None, :]
        s = jnp.where(s > 0, s, NEG_SLOPE * s)
        s = jnp.where(adj > 0, s, -jnp.inf)
        attn = jax.nn.softmax(s, axis=-1)
        outs.append(attn @ hf_h)
    emb = jnp.concatenate(outs, axis=-1) + raw["b_gat"]
    te = emb[team_idx]
    h1 = jax.nn.relu(te @ raw["aw1"] + raw["ab1"])
    h2 = jax.nn.relu(h1 @ raw["aw2"] + raw["ab2"])
    out = h2 @ raw["aw3"] + raw["ab3"]
    mean = out[:, :ACTION_DIM]
    std = jnp.exp(jnp.clip(out[:, ACTION_DIM:], LOG_STD_MIN, LOG_STD_MAX))
    c1 = jax.nn.relu(observation @ raw["cw1"] + raw["cb1"])
    c2 = jax.nn.relu(c1 @ raw["cw2"] + raw["cb2"])
    v = c2 @ raw["cw3"] + raw["cb3"]
    return mean, std, v


# ----------------------------- demo -----------------------------

if __name__ == "__main__":
    # Small, module-consistent shapes.
    N_PURSUERS, N_EVADERS = 2, 2
    TEAM = "pursuer"
    BATCH_SIZE = 1
    N = BATCH_SIZE * (N_PURSUERS + N_EVADERS)   # nodes in the (batched) graph
    F_IN = 5                                    # GATConv input feature dim
    IN_DIM = 16                                 # critic observation dim
    HIDDEN = 256                                # mlp_hidden_dim (configurable in __init__)

    key = jax.random.PRNGKey(0)
    ks = jax.random.split(key, 20)

    def init(k, shape, scale=0.1):
        return scale * jax.random.normal(k, shape, dtype=jnp.float32)

    # graph node features + critic observation
    graph_x = init(ks[0], (N, F_IN), 0.5)
    observation = init(ks[1], (2, IN_DIM), 0.5)

    # deterministic edge_index (ring + skip connections), then dense adjacency with self loops
    edge_src = jnp.array([(i + 1) % N for i in range(N)] + [(i + 2) % N for i in range(N)],
                         dtype=jnp.int32)
    edge_dst = jnp.array(list(range(N)) * 2, dtype=jnp.int32)
    adj = jnp.zeros((N, N), jnp.float32).at[edge_dst, edge_src].set(1.0)
    adj = adj.at[jnp.arange(N), jnp.arange(N)].set(1.0)   # GATConv add_self_loops=True
    # TODO(synk): graph.edge_attr is ignored, matching GATConv built without edge_dim.

    raw_params = dict(
        # actor_gnn = GATConv(5, 128, heads=4, concat=True); att_src/att_dst both [HEADS, HEAD_DIM]
        w_gat=init(ks[2], (F_IN, HEADS * HEAD_DIM), 0.2),
        att_src=init(ks[3], (HEADS, HEAD_DIM), 0.2),
        att_dst=init(ks[4], (HEADS, HEAD_DIM), 0.2),
        b_gat=init(ks[5], (1, HEADS * HEAD_DIM), 0.1),
        # actor MLP: 512 -> HIDDEN -> HIDDEN -> 2*action_dim
        aw1=init(ks[6], (HEADS * HEAD_DIM, HIDDEN)), ab1=init(ks[7], (1, HIDDEN)),
        aw2=init(ks[8], (HIDDEN, HIDDEN)),           ab2=init(ks[9], (1, HIDDEN)),
        aw3=init(ks[10], (HIDDEN, 2 * ACTION_DIM)),  ab3=init(ks[11], (1, 2 * ACTION_DIM)),
        # critic MLP: in_dim -> HIDDEN -> HIDDEN -> 1
        cw1=init(ks[12], (IN_DIM, HIDDEN)),          cb1=init(ks[13], (1, HIDDEN)),
        cw2=init(ks[14], (HIDDEN, HIDDEN)),          cb2=init(ks[15], (1, HIDDEN)),
        cw3=init(ks[16], (HIDDEN, 1)),               cb3=init(ks[17], (1, 1)),
    )
    kparams = pack_params(raw_params)

    # team index selection (pursuers: idx % (p+e) < p)
    group = N_PURSUERS + N_EVADERS
    if TEAM == "pursuer":
        team_idx = jnp.array([i for i in range(N) if (i % group) < N_PURSUERS], jnp.int32)
    else:
        team_idx = jnp.array([i for i in range(N) if (i % group) >= N_PURSUERS], jnp.int32)

    mean, std, value = actor_critic_gnn_forward(kparams, graph_x, adj, observation, team_idx,
                                                batch_size=BATCH_SIZE)
    jax.block_until_ready((mean, std, value))

    assert mean.shape == (len(team_idx), ACTION_DIM)
    assert std.shape == (len(team_idx), ACTION_DIM)
    assert value.shape == (observation.shape[0], 1)
    assert bool(jnp.all(jnp.isfinite(mean))) and bool(jnp.all(std > 0.0))

    # loose-tolerance parity check vs pure-f32 JAX reference (bf16 MXU + approx reciprocal)
    mean_r, std_r, value_r = reference_forward(raw_params, graph_x, adj, observation, team_idx)
    assert bool(jnp.allclose(mean, mean_r, atol=1e-1, rtol=1e-1))
    assert bool(jnp.allclose(std, std_r, atol=1e-1, rtol=1e-1))
    assert bool(jnp.allclose(value, value_r, atol=1e-1, rtol=1e-1))

    print("KERNEL_OK")
</pallas_src>

<mosaic_0001>
module attributes {stable_mosaic.version = 11 : i64} {
  func.func @fused_actor_critic_kernel(%arg0: memref<4x5xbf16, #tpu.memory_space<vmem>>, %arg1: memref<4x4xbf16, #tpu.memory_space<vmem>>, %arg2: memref<2x4xbf16, #tpu.memory_space<vmem>>, %arg3: memref<5x512xbf16, #tpu.memory_space<vmem>>, %arg4: memref<512x8xbf16, #tpu.memory_space<vmem>>, %arg5: memref<512x256xbf16, #tpu.memory_space<vmem>>, %arg6: memref<256x256xbf16, #tpu.memory_space<vmem>>, %arg7: memref<256x4xbf16, #tpu.memory_space<vmem>>, %arg8: memref<2x16xbf16, #tpu.memory_space<vmem>>, %arg9: memref<16x256xbf16, #tpu.memory_space<vmem>>, %arg10: memref<256x256xbf16, #tpu.memory_space<vmem>>, %arg11: memref<256x1xbf16, #tpu.memory_space<vmem>>, %arg12: memref<1x1541xf32, #tpu.memory_space<vmem>>, %arg13: memref<2x4xf32, #tpu.memory_space<vmem>>, %arg14: memref<2x1xf32, #tpu.memory_space<vmem>>, %arg15: memref<4x512xbf16, #tpu.memory_space<vmem>>) attributes {dimension_semantics = [], scalar_prefetch = 0 : i64, scratch_operands = 1 : i64, tpu.core_type = #tpu.core_type<tc>} {
    %c0 = arith.constant 0 : index
    %c0_0 = arith.constant 0 : index
    %0 = vector.load %arg12[%c0, %c0_0] : memref<1x1541xf32, #tpu.memory_space<vmem>>, vector<1x512xf32>
    %c0_1 = arith.constant 0 : index
    %c512 = arith.constant 512 : index
    %1 = vector.load %arg12[%c0_1, %c512] : memref<1x1541xf32, #tpu.memory_space<vmem>>, vector<1x256xf32>
    %c0_2 = arith.constant 0 : index
    %c768 = arith.constant 768 : index
    %2 = vector.load %arg12[%c0_2, %c768] : memref<1x1541xf32, #tpu.memory_space<vmem>>, vector<1x256xf32>
    %c0_3 = arith.constant 0 : index
    %c1024 = arith.constant 1024 : index
    %3 = vector.load %arg12[%c0_3, %c1024] : memref<1x1541xf32, #tpu.memory_space<vmem>>, vector<1x4xf32>
    %c0_4 = arith.constant 0 : index
    %c1028 = arith.constant 1028 : index
    %4 = vector.load %arg12[%c0_4, %c1028] : memref<1x1541xf32, #tpu.memory_space<vmem>>, vector<1x256xf32>
    %c0_5 = arith.constant 0 : index
    %c1284 = arith.constant 1284 : index
    %5 = vector.load %arg12[%c0_5, %c1284] : memref<1x1541xf32, #tpu.memory_space<vmem>>, vector<1x256xf32>
    %c0_6 = arith.constant 0 : index
    %c1540 = arith.constant 1540 : index
    %6 = vector.load %arg12[%c0_6, %c1540] : memref<1x1541xf32, #tpu.memory_space<vmem>>, vector<1x1xf32>
    %c0_7 = arith.constant 0 : index
    %c0_8 = arith.constant 0 : index
    %7 = vector.load %arg0[%c0_7, %c0_8] : memref<4x5xbf16, #tpu.memory_space<vmem>>, vector<4x5xbf16>
    %c0_9 = arith.constant 0 : index
    %c0_10 = arith.constant 0 : index
    %8 = vector.load %arg3[%c0_9, %c0_10] : memref<5x512xbf16, #tpu.memory_space<vmem>>, vector<5x512xbf16>
    %cst = arith.constant dense<0.000000e+00> : vector<4x512xf32>
    %9 = tpu.matmul %7, %8, %cst {dimension_numbers = #tpu.dot_dimension_numbers<[1], [0], [0], [1], [0, 0, 1, 1], [], []>} : vector<4x5xbf16>, vector<5x512xbf16>, vector<4x512xf32> -> vector<4x512xf32>
    %10 = arith.truncf %9 : vector<4x512xf32> to vector<4x512xbf16>
    %c0_11 = arith.constant 0 : index
    %c0_12 = arith.constant 0 : index
    %11 = vector.load %arg4[%c0_11, %c0_12] : memref<512x8xbf16, #tpu.memory_space<vmem>>, vector<512x8xbf16>
    %cst_13 = arith.constant dense<0.000000e+00> : vector<4x8xf32>
    %12 = tpu.matmul %10, %11, %cst_13 {dimension_numbers = #tpu.dot_dimension_numbers<[1], [0], [0], [1], [0, 0, 1, 1], [], []>} : vector<4x512xbf16>, vector<512x8xbf16>, vector<4x8xf32> -> vector<4x8xf32>
    %13 = vector.extract_strided_slice %12 {offsets = [0, 0], sizes = [4, 4], strides = [1, 1]} : vector<4x8xf32> to vector<4x4xf32>
    %14 = vector.extract_strided_slice %12 {offsets = [0, 4], sizes = [4, 4], strides = [1, 1]} : vector<4x8xf32> to vector<4x4xf32>
    %15 = tpu.transpose %14, [1, 0] : vector<4x4xf32> -> vector<4x4xf32>
    %c0_14 = arith.constant 0 : index
    %c0_15 = arith.constant 0 : index
    %16 = vector.load %arg1[%c0_14, %c0_15] : memref<4x4xbf16, #tpu.memory_space<vmem>>, vector<4x4xbf16>
    %17 = arith.extf %16 : vector<4x4xbf16> to vector<4x4xf32>
    %18 = vector.extract_strided_slice %13 {offsets = [0, 0], sizes = [4, 1], strides = [1, 1]} : vector<4x4xf32> to vector<4x1xf32>
    %19 = vector.extract_strided_slice %15 {offsets = [0, 0], sizes = [1, 4], strides = [1, 1]} : vector<4x4xf32> to vector<1x4xf32>
    %20 = vector.broadcast %18 : vector<4x1xf32> to vector<4x4xf32>
    %21 = vector.broadcast %19 : vector<1x4xf32> to vector<4x4xf32>
    %22 = arith.addf %20, %21 : vector<4x4xf32>
    %cst_16 = arith.constant 2.000000e-01 : f32
    %23 = vector.broadcast %cst_16 : f32 to vector<4x4xf32>
    %24 = arith.mulf %23, %22 : vector<4x4xf32>
    %25 = arith.maximumf %22, %24 : vector<4x4xf32>
    %26 = arith.addf %25, %17 : vector<4x4xf32>
    %cst_17 = arith.constant dense<0xFF800000> : vector<4xf32>
    %27 = vector.multi_reduction <maximumf>, %26, %cst_17 [1] : vector<4x4xf32> to vector<4xf32>
    %28 = vector.shape_cast %27 : vector<4xf32> to vector<4x1xf32>
    %29 = vector.broadcast %28 : vector<4x1xf32> to vector<4x4xf32>
    %30 = arith.subf %26, %29 : vector<4x4xf32>
    %31 = math.exp %30 : vector<4x4xf32>
    %cst_18 = arith.constant dense<0.000000e+00> : vector<4xf32>
    %32 = vector.multi_reduction <add>, %31, %cst_18 [1] : vector<4x4xf32> to vector<4xf32>
    %33 = vector.shape_cast %32 : vector<4xf32> to vector<4x1xf32>
    %34 = tpu.reciprocal %33 {approx = true} : vector<4x1xf32> -> vector<4x1xf32>
    %35 = vector.broadcast %34 : vector<4x1xf32> to vector<4x4xf32>
    %36 = arith.mulf %31, %35 : vector<4x4xf32>
    %37 = arith.truncf %36 : vector<4x4xf32> to vector<4x4xbf16>
    %38 = vector.extract_strided_slice %10 {offsets = [0, 0], sizes = [4, 128], strides = [1, 1]} : vector<4x512xbf16> to vector<4x128xbf16>
    %cst_19 = arith.constant dense<0.000000e+00> : vector<4x128xf32>
    %39 = tpu.matmul %37, %38, %cst_19 {dimension_numbers = #tpu.dot_dimension_numbers<[1], [0], [0], [1], [0, 0, 1, 1], [], []>} : vector<4x4xbf16>, vector<4x128xbf16>, vector<4x128xf32> -> vector<4x128xf32>
    %40 = arith.truncf %39 : vector<4x128xf32> to vector<4x128xbf16>
    %c0_20 = arith.constant 0 : index
    %c0_21 = arith.constant 0 : index
    %41 = vector.load %arg15[%c0_20, %c0_21] : memref<4x512xbf16, #tpu.memory_space<vmem>>, vector<4x128xbf16>
    tpu.vector_store %arg15[%c0_20, %c0_21], %40 {strides = array<i32>} : memref<4x512xbf16, #tpu.memory_space<vmem>>, vector<4x128xbf16>,
    %42 = vector.extract_strided_slice %13 {offsets = [0, 1], sizes = [4, 1], strides = [1, 1]} : vector<4x4xf32> to vector<4x1xf32>
    %43 = vector.extract_strided_slice %15 {offsets = [1, 0], sizes = [1, 4], strides = [1, 1]} : vector<4x4xf32> to vector<1x4xf32>
    %44 = vector.broadcast %42 : vector<4x1xf32> to vector<4x4xf32>
    %45 = vector.broadcast %43 : vector<1x4xf32> to vector<4x4xf32>
    %46 = arith.addf %44, %45 : vector<4x4xf32>
    %cst_22 = arith.constant 2.000000e-01 : f32
    %47 = vector.broadcast %cst_22 : f32 to vector<4x4xf32>
    %48 = arith.mulf %47, %46 : vector<4x4xf32>
    %49 = arith.maximumf %46, %48 : vector<4x4xf32>
    %50 = arith.addf %49, %17 : vector<4x4xf32>
    %cst_23 = arith.constant dense<0xFF800000> : vector<4xf32>
    %51 = vector.multi_reduction <maximumf>, %50, %cst_23 [1] : vector<4x4xf32> to vector<4xf32>
    %52 = vector.shape_cast %51 : vector<4xf32> to vector<4x1xf32>
    %53 = vector.broadcast %52 : vector<4x1xf32> to vector<4x4xf32>
    %54 = arith.subf %50, %53 : vector<4x4xf32>
    %55 = math.exp %54 : vector<4x4xf32>
    %cst_24 = arith.constant dense<0.000000e+00> : vector<4xf32>
    %56 = vector.multi_reduction <add>, %55, %cst_24 [1] : vector<4x4xf32> to vector<4xf32>
    %57 = vector.shape_cast %56 : vector<4xf32> to vector<4x1xf32>
    %58 = tpu.reciprocal %57 {approx = true} : vector<4x1xf32> -> vector<4x1xf32>
    %59 = vector.broadcast %58 : vector<4x1xf32> to vector<4x4xf32>
    %60 = arith.mulf %55, %59 : vector<4x4xf32>
    %61 = arith.truncf %60 : vector<4x4xf32> to vector<4x4xbf16>
    %62 = vector.extract_strided_slice %10 {offsets = [0, 128], sizes = [4, 128], strides = [1, 1]} : vector<4x512xbf16> to vector<4x128xbf16>
    %cst_25 = arith.constant dense<0.000000e+00> : vector<4x128xf32>
    %63 = tpu.matmul %61, %62, %cst_25 {dimension_numbers = #tpu.dot_dimension_numbers<[1], [0], [0], [1], [0, 0, 1, 1], [], []>} : vector<4x4xbf16>, vector<4x128xbf16>, vector<4x128xf32> -> vector<4x128xf32>
    %64 = arith.truncf %63 : vector<4x128xf32> to vector<4x128xbf16>
    %c0_26 = arith.constant 0 : index
    %c128 = arith.constant 128 : index
    %65 = vector.load %arg15[%c0_26, %c128] : memref<4x512xbf16, #tpu.memory_space<vmem>>, vector<4x128xbf16>
    tpu.vector_store %arg15[%c0_26, %c128], %64 {strides = array<i32>} : memref<4x512xbf16, #tpu.memory_space<vmem>>, vector<4x128xbf16>,
    %66 = vector.extract_strided_slice %13 {offsets = [0, 2], sizes = [4, 1], strides = [1, 1]} : vector<4x4xf32> to vector<4x1xf32>
    %67 = vector.extract_strided_slice %15 {offsets = [2, 0], sizes = [1, 4], strides = [1, 1]} : vector<4x4xf32> to vector<1x4xf32>
    %68 = vector.broadcast %66 : vector<4x1xf32> to vector<4x4xf32>
    %69 = vector.broadcast %67 : vector<1x4xf32> to vector<4x4xf32>
    %70 = arith.addf %68, %69 : vector<4x4xf32>
    %cst_27 = arith.constant 2.000000e-01 : f32
    %71 = vector.broadcast %cst_27 : f32 to vector<4x4xf32>
    %72 = arith.mulf %71, %70 : vector<4x4xf32>
    %73 = arith.maximumf %70, %72 : vector<4x4xf32>
    %74 = arith.addf %73, %17 : vector<4x4xf32>
    %cst_28 = arith.constant dense<0xFF800000> : vector<4xf32>
    %75 = vector.multi_reduction <maximumf>, %74, %cst_28 [1] : vector<4x4xf32> to vector<4xf32>
    %76 = vector.shape_cast %75 : vector<4xf32> to vector<4x1xf32>
    %77 = vector.broadcast %76 : vector<4x1xf32> to vector<4x4xf32>
    %78 = arith.subf %74, %77 : vector<4x4xf32>
    %79 = math.exp %78 : vector<4x4xf32>
    %cst_29 = arith.constant dense<0.000000e+00> : vector<4xf32>
    %80 = vector.multi_reduction <add>, %79, %cst_29 [1] : vector<4x4xf32> to vector<4xf32>
    %81 = vector.shape_cast %80 : vector<4xf32> to vector<4x1xf32>
    %82 = tpu.reciprocal %81 {approx = true} : vector<4x1xf32> -> vector<4x1xf32>
    %83 = vector.broadcast %82 : vector<4x1xf32> to vector<4x4xf32>
    %84 = arith.mulf %79, %83 : vector<4x4xf32>
    %85 = arith.truncf %84 : vector<4x4xf32> to vector<4x4xbf16>
    %86 = vector.extract_strided_slice %10 {offsets = [0, 256], sizes = [4, 128], strides = [1, 1]} : vector<4x512xbf16> to vector<4x128xbf16>
    %cst_30 = arith.constant dense<0.000000e+00> : vector<4x128xf32>
    %87 = tpu.matmul %85, %86, %cst_30 {dimension_numbers = #tpu.dot_dimension_numbers<[1], [0], [0], [1], [0, 0, 1, 1], [], []>} : vector<4x4xbf16>, vector<4x128xbf16>, vector<4x128xf32> -> vector<4x128xf32>
    %88 = arith.truncf %87 : vector<4x128xf32> to vector<4x128xbf16>
    %c0_31 = arith.constant 0 : index
    %c256 = arith.constant 256 : index
    %89 = vector.load %arg15[%c0_31, %c256] : memref<4x512xbf16, #tpu.memory_space<vmem>>, vector<4x128xbf16>
    tpu.vector_store %arg15[%c0_31, %c256], %88 {strides = array<i32>} : memref<4x512xbf16, #tpu.memory_space<vmem>>, vector<4x128xbf16>,
    %90 = vector.extract_strided_slice %13 {offsets = [0, 3], sizes = [4, 1], strides = [1, 1]} : vector<4x4xf32> to vector<4x1xf32>
    %91 = vector.extract_strided_slice %15 {offsets = [3, 0], sizes = [1, 4], strides = [1, 1]} : vector<4x4xf32> to vector<1x4xf32>
    %92 = vector.broadcast %90 : vector<4x1xf32> to vector<4x4xf32>
    %93 = vector.broadcast %91 : vector<1x4xf32> to vector<4x4xf32>
    %94 = arith.addf %92, %93 : vector<4x4xf32>
    %cst_32 = arith.constant 2.000000e-01 : f32
    %95 = vector.broadcast %cst_32 : f32 to vector<4x4xf32>
    %96 = arith.mulf %95, %94 : vector<4x4xf32>
    %97 = arith.maximumf %94, %96 : vector<4x4xf32>
    %98 = arith.addf %97, %17 : vector<4x4xf32>
    %cst_33 = arith.constant dense<0xFF800000> : vector<4xf32>
    %99 = vector.multi_reduction <maximumf>, %98, %cst_33 [1] : vector<4x4xf32> to vector<4xf32>
    %100 = vector.shape_cast %99 : vector<4xf32> to vector<4x1xf32>
    %101 = vector.broadcast %100 : vector<4x1xf32> to vector<4x4xf32>
    %102 = arith.subf %98, %101 : vector<4x4xf32>
    %103 = math.exp %102 : vector<4x4xf32>
    %cst_34 = arith.constant dense<0.000000e+00> : vector<4xf32>
    %104 = vector.multi_reduction <add>, %103, %cst_34 [1] : vector<4x4xf32> to vector<4xf32>
    %105 = vector.shape_cast %104 : vector<4xf32> to vector<4x1xf32>
    %106 = tpu.reciprocal %105 {approx = true} : vector<4x1xf32> -> vector<4x1xf32>
    %107 = vector.broadcast %106 : vector<4x1xf32> to vector<4x4xf32>
    %108 = arith.mulf %103, %107 : vector<4x4xf32>
    %109 = arith.truncf %108 : vector<4x4xf32> to vector<4x4xbf16>
    %110 = vector.extract_strided_slice %10 {offsets = [0, 384], sizes = [4, 128], strides = [1, 1]} : vector<4x512xbf16> to vector<4x128xbf16>
    %cst_35 = arith.constant dense<0.000000e+00> : vector<4x128xf32>
    %111 = tpu.matmul %109, %110, %cst_35 {dimension_numbers = #tpu.dot_dimension_numbers<[1], [0], [0], [1], [0, 0, 1, 1], [], []>} : vector<4x4xbf16>, vector<4x128xbf16>, vector<4x128xf32> -> vector<4x128xf32>
    %112 = arith.truncf %111 : vector<4x128xf32> to vector<4x128xbf16>
    %c0_36 = arith.constant 0 : index
    %c384 = arith.constant 384 : index
    %113 = vector.load %arg15[%c0_36, %c384] : memref<4x512xbf16, #tpu.memory_space<vmem>>, vector<4x128xbf16>
    tpu.vector_store %arg15[%c0_36, %c384], %112 {strides = array<i32>} : memref<4x512xbf16, #tpu.memory_space<vmem>>, vector<4x128xbf16>,
    %c0_37 = arith.constant 0 : index
    %c0_38 = arith.constant 0 : index
    %114 = vector.load %arg2[%c0_37, %c0_38] : memref<2x4xbf16, #tpu.memory_space<vmem>>, vector<2x4xbf16>
    %c0_39 = arith.constant 0 : index
    %c0_40 = arith.constant 0 : index
    %115 = vector.load %arg15[%c0_39, %c0_40] : memref<4x512xbf16, #tpu.memory_space<vmem>>, vector<4x512xbf16>
    %cst_41 = arith.constant dense<0.000000e+00> : vector<2x512xf32>
    %116 = tpu.matmul %114, %115, %cst_41 {dimension_numbers = #tpu.dot_dimension_numbers<[1], [0], [0], [1], [0, 0, 1, 1], [], []>} : vector<2x4xbf16>, vector<4x512xbf16>, vector<2x512xf32> -> vector<2x512xf32>
    %117 = vector.broadcast %0 : vector<1x512xf32> to vector<2x512xf32>
    %118 = arith.addf %116, %117 : vector<2x512xf32>
    %119 = arith.truncf %118 : vector<2x512xf32> to vector<2x512xbf16>
    %c0_42 = arith.constant 0 : index
    %c0_43 = arith.constant 0 : index
    %120 = vector.load %arg5[%c0_42, %c0_43] : memref<512x256xbf16, #tpu.memory_space<vmem>>, vector<512x256xbf16>
    %cst_44 = arith.constant dense<0.000000e+00> : vector<2x256xf32>
    %121 = tpu.matmul %119, %120, %cst_44 {dimension_numbers = #tpu.dot_dimension_numbers<[1], [0], [0], [1], [0, 0, 1, 1], [], []>} : vector<2x512xbf16>, vector<512x256xbf16>, vector<2x256xf32> -> vector<2x256xf32>
    %122 = vector.broadcast %1 : vector<1x256xf32> to vector<2x256xf32>
    %123 = arith.addf %121, %122 : vector<2x256xf32>
    %cst_45 = arith.constant 0.000000e+00 : f32
    %124 = vector.broadcast %cst_45 : f32 to vector<2x256xf32>
    %125 = arith.maximumf %123, %124 : vector<2x256xf32>
    %126 = arith.truncf %125 : vector<2x256xf32> to vector<2x256xbf16>
    %c0_46 = arith.constant 0 : index
    %c0_47 = arith.constant 0 : index
    %127 = vector.load %arg6[%c0_46, %c0_47] : memref<256x256xbf16, #tpu.memory_space<vmem>>, vector<256x256xbf16>
    %cst_48 = arith.constant dense<0.000000e+00> : vector<2x256xf32>
    %128 = tpu.matmul %126, %127, %cst_48 {dimension_numbers = #tpu.dot_dimension_numbers<[1], [0], [0], [1], [0, 0, 1, 1], [], []>} : vector<2x256xbf16>, vector<256x256xbf16>, vector<2x256xf32> -> vector<2x256xf32>
    %129 = vector.broadcast %2 : vector<1x256xf32> to vector<2x256xf32>
    %130 = arith.addf %128, %129 : vector<2x256xf32>
    %cst_49 = arith.constant 0.000000e+00 : f32
    %131 = vector.broadcast %cst_49 : f32 to vector<2x256xf32>
    %132 = arith.maximumf %130, %131 : vector<2x256xf32>
    %133 = arith.truncf %132 : vector<2x256xf32> to vector<2x256xbf16>
    %c0_50 = arith.constant 0 : index
    %c0_51 = arith.constant 0 : index
    %134 = vector.load %arg7[%c0_50, %c0_51] : memref<256x4xbf16, #tpu.memory_space<vmem>>, vector<256x4xbf16>
    %cst_52 = arith.constant dense<0.000000e+00> : vector<2x4xf32>
    %135 = tpu.matmul %133, %134, %cst_52 {dimension_numbers = #tpu.dot_dimension_numbers<[1], [0], [0], [1], [0, 0, 1, 1], [], []>} : vector<2x256xbf16>, vector<256x4xbf16>, vector<2x4xf32> -> vector<2x4xf32>
    %136 = vector.broadcast %3 : vector<1x4xf32> to vector<2x4xf32>
    %137 = arith.addf %135, %136 : vector<2x4xf32>
    %138 = vector.extract_strided_slice %137 {offsets = [0, 0], sizes = [2, 2], strides = [1, 1]} : vector<2x4xf32> to vector<2x2xf32>
    %139 = vector.extract_strided_slice %137 {offsets = [0, 2], sizes = [2, 2], strides = [1, 1]} : vector<2x4xf32> to vector<2x2xf32>
    %cst_53 = arith.constant -2.000000e+01 : f32
    %cst_54 = arith.constant 2.000000e+00 : f32
    %140 = vector.broadcast %cst_53 : f32 to vector<2x2xf32>
    %141 = arith.maximumf %140, %139 : vector<2x2xf32>
    %142 = vector.broadcast %cst_54 : f32 to vector<2x2xf32>
    %143 = arith.minimumf %142, %141 : vector<2x2xf32>
    %144 = math.exp %143 : vector<2x2xf32>
    %145 = tpu.concatenate %138, %144 in 1 : vector<2x2xf32>, vector<2x2xf32> -> vector<2x4xf32>
    %c0_55 = arith.constant 0 : index
    %c0_56 = arith.constant 0 : index
    %146 = vector.load %arg13[%c0_55, %c0_56] : memref<2x4xf32, #tpu.memory_space<vmem>>, vector<2x4xf32>
    tpu.vector_store %arg13[%c0_55, %c0_56], %145 {strides = array<i32>} : memref<2x4xf32, #tpu.memory_space<vmem>>, vector<2x4xf32>,
    %c0_57 = arith.constant 0 : index
    %c0_58 = arith.constant 0 : index
    %147 = vector.load %arg8[%c0_57, %c0_58] : memref<2x16xbf16, #tpu.memory_space<vmem>>, vector<2x16xbf16>
    %c0_59 = arith.constant 0 : index
    %c0_60 = arith.constant 0 : index
    %148 = vector.load %arg9[%c0_59, %c0_60] : memref<16x256xbf16, #tpu.memory_space<vmem>>, vector<16x256xbf16>
    %cst_61 = arith.constant dense<0.000000e+00> : vector<2x256xf32>
    %149 = tpu.matmul %147, %148, %cst_61 {dimension_numbers = #tpu.dot_dimension_numbers<[1], [0], [0], [1], [0, 0, 1, 1], [], []>} : vector<2x16xbf16>, vector<16x256xbf16>, vector<2x256xf32> -> vector<2x256xf32>
    %150 = vector.broadcast %4 : vector<1x256xf32> to vector<2x256xf32>
    %151 = arith.addf %149, %150 : vector<2x256xf32>
    %cst_62 = arith.constant 0.000000e+00 : f32
    %152 = vector.broadcast %cst_62 : f32 to vector<2x256xf32>
    %153 = arith.maximumf %151, %152 : vector<2x256xf32>
    %154 = arith.truncf %153 : vector<2x256xf32> to vector<2x256xbf16>
    %c0_63 = arith.constant 0 : index
    %c0_64 = arith.constant 0 : index
    %155 = vector.load %arg10[%c0_63, %c0_64] : memref<256x256xbf16, #tpu.memory_space<vmem>>, vector<256x256xbf16>
    %cst_65 = arith.constant dense<0.000000e+00> : vector<2x256xf32>
    %156 = tpu.matmul %154, %155, %cst_65 {dimension_numbers = #tpu.dot_dimension_numbers<[1], [0], [0], [1], [0, 0, 1, 1], [], []>} : vector<2x256xbf16>, vector<256x256xbf16>, vector<2x256xf32> -> vector<2x256xf32>
    %157 = vector.broadcast %5 : vector<1x256xf32> to vector<2x256xf32>
    %158 = arith.addf %156, %157 : vector<2x256xf32>
    %cst_66 = arith.constant 0.000000e+00 : f32
    %159 = vector.broadcast %cst_66 : f32 to vector<2x256xf32>
    %160 = arith.maximumf %158, %159 : vector<2x256xf32>
    %161 = arith.truncf %160 : vector<2x256xf32> to vector<2x256xbf16>
    %c0_67 = arith.constant 0 : index
    %c0_68 = arith.constant 0 : index
    %162 = vector.load %arg11[%c0_67, %c0_68] : memref<256x1xbf16, #tpu.memory_space<vmem>>, vector<256x1xbf16>
    %cst_69 = arith.constant dense<0.000000e+00> : vector<2x1xf32>
    %163 = tpu.matmul %161, %162, %cst_69 {dimension_numbers = #tpu.dot_dimension_numbers<[1], [0], [0], [1], [0, 0, 1, 1], [], []>} : vector<2x256xbf16>, vector<256x1xbf16>, vector<2x1xf32> -> vector<2x1xf32>
    %164 = vector.broadcast %6 : vector<1x1xf32> to vector<2x1xf32>
    %165 = arith.addf %163, %164 : vector<2x1xf32>
    %c0_70 = arith.constant 0 : index
    %c0_71 = arith.constant 0 : index
    %166 = vector.load %arg14[%c0_70, %c0_71] : memref<2x1xf32, #tpu.memory_space<vmem>>, vector<2x1xf32>
    tpu.vector_store %arg14[%c0_70, %c0_71], %165 {strides = array<i32>} : memref<2x1xf32, #tpu.memory_space<vmem>>, vector<2x1xf32>,
    return
  }
}

</mosaic_0001>

<llo_original>
// kernel: tpu_custom_call.1
$region0: #{tpu_custom_call.1}
  #allocation0 [shape = 'u32[]', space=smem, size = 0x4, offset = 0x4, fixed_abs, tag = 'smem constant byte address 0x4 - core index']
  #allocation1 [shape = 'u32[72,128]{1,0:T(1,128)}', space=vmem, size = 0x9000, scoped, tag = 'internal scratch']
  #allocation2 [shape = 'bf16[4,512]{1,0:T(4,128)(2,1)}', space=vmem, size = 0x1000, scoped, tag = 'scratch operand']
  %s0 = inlined_call_operand.vmem [shape: bf16[4,5], index: 0, kind: input, shape index: {}]
  %s1 = inlined_call_operand.vmem [shape: bf16[4,4], index: 1, kind: input, shape index: {}]
  %s2 = inlined_call_operand.hbm [shape: bf16[2,4], index: 2, kind: input, shape index: {}]
  %s3 = inlined_call_operand.vmem [shape: bf16[5,512], index: 3, kind: input, shape index: {}]
  %s4 = inlined_call_operand.vmem [shape: bf16[512,8], index: 4, kind: input, shape index: {}]
  %s5 = inlined_call_operand.vmem [shape: bf16[512,256], index: 5, kind: input, shape index: {}]
  %s6 = inlined_call_operand.hbm [shape: bf16[256,256], index: 6, kind: input, shape index: {}]
  %s7 = inlined_call_operand.vmem [shape: bf16[256,4], index: 7, kind: input, shape index: {}]
  %s8 = inlined_call_operand.hbm [shape: bf16[2,16], index: 8, kind: input, shape index: {}]
  %s9 = inlined_call_operand.hbm [shape: bf16[16,256], index: 9, kind: input, shape index: {}]
  %s10 = inlined_call_operand.hbm [shape: bf16[256,256], index: 10, kind: input, shape index: {}]
  %s11 = inlined_call_operand.vmem [shape: bf16[256,1], index: 11, kind: input, shape index: {}]
  %s12 = inlined_call_operand.vmem [shape: f32[1,1541], index: 12, kind: input, shape index: {}]
  %s13 = inlined_call_operand.hbm [shape: f32[2,4], index: 13, kind: output, shape index: {0}]
  %s14 = inlined_call_operand.vmem [shape: f32[2,1], index: 14, kind: output, shape index: {1}]
  %15 = xla_tuple %s13, %s14
  %s16 = sld [smem:[#allocation0]]
  $region90: #{tpu_custom_call.1} parent=0
    _
  %s18 = ssub.s32 1, %s16
  %s19 = scalar_select 0, %s18, %s16
  $region1: #{tpu_custom_call.1} parent=0
    #allocation3 [shape = 'u8[512]{0}', space=vmem, size = 0x400, scoped, tag = 'input window, operand 2, single buffered']
    #allocation4 [shape = 's32[1]{0}', space=sflag, size = 0x4, scoped, tag = 'scoped memory for tpu_custom_call.1']
    #allocation5 [shape = 's32[1]{0}', space=sflag, size = 0x4, scoped, tag = 'scoped memory for tpu_custom_call.1']
    #allocation6 [shape = 'u8[131072]{0}', space=vmem, size = 0x20000, scoped, tag = 'input window, operand 6, single buffered']
    #allocation7 [shape = 's32[1]{0}', space=sflag, size = 0x4, scoped, tag = 'scoped memory for tpu_custom_call.1']
    #allocation8 [shape = 'u8[512]{0}', space=vmem, size = 0x400, scoped, tag = 'input window, operand 8, single buffered']
    #allocation9 [shape = 'u8[8192]{0}', space=vmem, size = 0x2000, scoped, tag = 'input window, operand 9, single buffered']
    #allocation10 [shape = 's32[1]{0}', space=sflag, size = 0x4, scoped, tag = 'scoped memory for tpu_custom_call.1']
    #allocation11 [shape = 'u8[131072]{0}', space=vmem, size = 0x20000, scoped, tag = 'input window, operand 10, single buffered']
    #allocation12 [shape = 'u8[1024]{0}', space=vmem, size = 0x400, scoped, tag = 'output window, operand 0, single buffered']
    %20 = vsyncpa [#allocation4], 0
    %21 = vsyncpa [#allocation7], 0
    %22 = vsyncpa [#allocation10], 0
    %23 = vsyncpa [#allocation5], 0
    // Predicated region
    $region2: #{tpu_custom_call.1} parent=1 // pred_check
      _
    $region3: #{tpu_custom_call.1} parent=1 // pred_check_branch
      %25 = sbr.rel (0) target = $region5
    $region4: #{tpu_custom_call.1} parent=1 // pred_region
      _
    $region5: #{tpu_custom_call.1} parent=1 // pred_fallthru
      _
    // Predicated region
    $region6: #{tpu_custom_call.1} parent=1 // pred_check
      _
    $region7: #{tpu_custom_call.1} parent=1 // pred_check_branch
      %27 = sbr.rel (0) target = $region9
    $region8: #{tpu_custom_call.1} parent=1 // pred_region
      _
    $region9: #{tpu_custom_call.1} parent=1 // pred_fallthru
      _
    // Predicated region
    $region10: #{tpu_custom_call.1} parent=1 // pred_check
      _
    $region11: #{tpu_custom_call.1} parent=1 // pred_check_branch
      %29 = sbr.rel (0) target = $region13
    $region12: #{tpu_custom_call.1} parent=1 // pred_region
      %31 = vsyncadd [#allocation4], 0
      %s33 = sshll.u32 %s2, 4
      %s34 = int_to_ptr.hbm [resolvable:$true] %s33
      %s35 = sshll.u32 [#allocation3], 4
      %s36 = int_to_ptr.vmem [resolvable:$true] %s35
      %38 = dma.hbm_to_vmem [thread:$0]  %s34, 16, %s36, [#allocation4]
    $region13: #{tpu_custom_call.1} parent=1 // pred_fallthru
      _
    // Predicated region
    $region14: #{tpu_custom_call.1} parent=1 // pred_check
      _
    $region15: #{tpu_custom_call.1} parent=1 // pred_check_branch
      %40 = sbr.rel (0) target = $region17
    $region16: #{tpu_custom_call.1} parent=1 // pred_region
      _
    $region17: #{tpu_custom_call.1} parent=1 // pred_fallthru
      _
    // Predicated region
    $region18: #{tpu_custom_call.1} parent=1 // pred_check
      _
    $region19: #{tpu_custom_call.1} parent=1 // pred_check_branch
      %42 = sbr.rel (0) target = $region21
    $region20: #{tpu_custom_call.1} parent=1 // pred_region
      _
    $region21: #{tpu_custom_call.1} parent=1 // pred_fallthru
      _
    // Predicated region
    $region22: #{tpu_custom_call.1} parent=1 // pred_check
      _
    $region23: #{tpu_custom_call.1} parent=1 // pred_check_branch
      %44 = sbr.rel (0) target = $region25
    $region24: #{tpu_custom_call.1} parent=1 // pred_region
      _
    $region25: #{tpu_custom_call.1} parent=1 // pred_fallthru
      _
    // Predicated region
    $region26: #{tpu_custom_call.1} parent=1 // pred_check
      _
    $region27: #{tpu_custom_call.1} parent=1 // pred_check_branch
      %46 = sbr.rel (0) target = $region29
    $region28: #{tpu_custom_call.1} parent=1 // pred_region
      %48 = vsyncadd [#allocation7], 0
      %s49 = sshll.u32 %s6, 4
      %s50 = int_to_ptr.hbm [resolvable:$true] %s49
      %s51 = sshll.u32 [#allocation6], 4
      %s52 = int_to_ptr.vmem [resolvable:$true] %s51
      %57 = dma.hbm_to_vmem [thread:$0]  %s50, 4096, %s52, [#allocation7], 128, 128, 8
    $region29: #{tpu_custom_call.1} parent=1 // pred_fallthru
      _
    // Predicated region
    $region30: #{tpu_custom_call.1} parent=1 // pred_check
      _
    $region31: #{tpu_custom_call.1} parent=1 // pred_check_branch
      %59 = sbr.rel (0) target = $region33
    $region32: #{tpu_custom_call.1} parent=1 // pred_region
      _
    $region33: #{tpu_custom_call.1} parent=1 // pred_fallthru
      _
    // Predicated region
    $region34: #{tpu_custom_call.1} parent=1 // pred_check
      _
    $region35: #{tpu_custom_call.1} parent=1 // pred_check_branch
      %61 = sbr.rel (0) target = $region37
    $region36: #{tpu_custom_call.1} parent=1 // pred_region
      %63 = vsyncadd [#allocation7], 0
      %s65 = sshll.u32 %s8, 4
      %s66 = int_to_ptr.hbm [resolvable:$true] %s65
      %s67 = sshll.u32 [#allocation8], 4
      %s68 = int_to_ptr.vmem [resolvable:$true] %s67
      %70 = dma.hbm_to_vmem [thread:$0]  %s66, 16, %s68, [#allocation7]
    $region37: #{tpu_custom_call.1} parent=1 // pred_fallthru
      _
    // Predicated region
    $region38: #{tpu_custom_call.1} parent=1 // pred_check
      _
    $region39: #{tpu_custom_call.1} parent=1 // pred_check_branch
      %72 = sbr.rel (0) target = $region41
    $region40: #{tpu_custom_call.1} parent=1 // pred_region
      %74 = vsyncadd [#allocation10], 0
      %s75 = sshll.u32 %s9, 4
      %s76 = int_to_ptr.hbm [resolvable:$true] %s75
      %s77 = sshll.u32 [#allocation9], 4
      %s78 = int_to_ptr.vmem [resolvable:$true] %s77
      %83 = dma.hbm_to_vmem [thread:$0]  %s76, 256, %s78, [#allocation10], 128, 128, 8
    $region41: #{tpu_custom_call.1} parent=1 // pred_fallthru
      _
    // Predicated region
    $region42: #{tpu_custom_call.1} parent=1 // pred_check
      _
    $region43: #{tpu_custom_call.1} parent=1 // pred_check_branch
      %85 = sbr.rel (0) target = $region45
    $region44: #{tpu_custom_call.1} parent=1 // pred_region
      %87 = vsyncadd [#allocation10], 0
      %s88 = sshll.u32 %s10, 4
      %s89 = int_to_ptr.hbm [resolvable:$true] %s88
      %s90 = sshll.u32 [#allocation11], 4
      %s91 = int_to_ptr.vmem [resolvable:$true] %s90
      %96 = dma.hbm_to_vmem [thread:$0]  %s89, 4096, %s91, [#allocation10], 128, 128, 8
    $region45: #{tpu_custom_call.1} parent=1 // pred_fallthru
      _
    // Predicated region
    $region46: #{tpu_custom_call.1} parent=1 // pred_check
      _
    $region47: #{tpu_custom_call.1} parent=1 // pred_check_branch
      %98 = sbr.rel (0) target = $region49
    $region48: #{tpu_custom_call.1} parent=1 // pred_region
      _
    $region49: #{tpu_custom_call.1} parent=1 // pred_fallthru
      _
    // Predicated region
    $region50: #{tpu_custom_call.1} parent=1 // pred_check
      _
    $region51: #{tpu_custom_call.1} parent=1 // pred_check_branch
      %100 = sbr.rel (0) target = $region53
    $region52: #{tpu_custom_call.1} parent=1 // pred_region
      _
    $region53: #{tpu_custom_call.1} parent=1 // pred_fallthru
      _
    // Predicated region
    $region54: #{tpu_custom_call.1} parent=1 // pred_check
      _
    $region55: #{tpu_custom_call.1} parent=1 // pred_check_branch
      %102 = sbr.rel (0) target = $region57
    $region56: #{tpu_custom_call.1} parent=1 // pred_region
      %104 = dma.done [#allocation4], 16
    $region57: #{tpu_custom_call.1} parent=1 // pred_fallthru
      _
    // Predicated region
    $region58: #{tpu_custom_call.1} parent=1 // pred_check
      _
    $region59: #{tpu_custom_call.1} parent=1 // pred_check_branch
      %106 = sbr.rel (0) target = $region61
    $region60: #{tpu_custom_call.1} parent=1 // pred_region
      %108 = dma.done [#allocation7], 4096
    $region61: #{tpu_custom_call.1} parent=1 // pred_fallthru
      _
    // Predicated region
    $region62: #{tpu_custom_call.1} parent=1 // pred_check
      _
    $region63: #{tpu_custom_call.1} parent=1 // pred_check_branch
      %110 = sbr.rel (0) target = $region65
    $region64: #{tpu_custom_call.1} parent=1 // pred_region
      %112 = dma.done [#allocation7], 16
    $region65: #{tpu_custom_call.1} parent=1 // pred_fallthru
      _
    // Predicated region
    $region66: #{tpu_custom_call.1} parent=1 // pred_check
      _
    $region67: #{tpu_custom_call.1} parent=1 // pred_check_branch
      %114 = sbr.rel (0) target = $region69
    $region68: #{tpu_custom_call.1} parent=1 // pred_region
      %116 = dma.done [#allocation10], 256
    $region69: #{tpu_custom_call.1} parent=1 // pred_fallthru
      _
    // Predicated region
    $region70: #{tpu_custom_call.1} parent=1 // pred_check
      _
    $region71: #{tpu_custom_call.1} parent=1 // pred_check_branch
      %118 = sbr.rel (0) target = $region73
    $region72: #{tpu_custom_call.1} parent=1 // pred_region
      %120 = dma.done [#allocation10], 4096
    $region73: #{tpu_custom_call.1} parent=1 // pred_fallthru
      _
    %v122 = vld [vmem:[%s12] sm:$0xf]
    %v123 = vld [vmem:[%s12 + $0x4] sm:$0x3]
    %v124 = vld [vmem:[%s12 + $0x6] sm:$0x3]
    %v125 = vld [vmem:[%s12 + $0x8] sm:$0x1]
    %v126 = vld [vmem:[%s12 + $0x8] sm:$0x7]
    %v127 = vld [vmem:[%s12 + $0xa] sm:$0x7]
    %v128 = vld [vmem:[%s12 + $0xc] sm:$0x1]
    %v129 = vld [vmem:[%s0] sm:$0x3]
    %v130 = vld [vmem:[%s3] sm:$0x77]
    %v131 = vld [vmem:[%s3 + $0x8] sm:$0x77]
    %v134 = vunpack.c.l.b16 %v130
    %v135 = vunpack.c.h.b16 %v130
    %v136 = vunpack.c.l.b16 %v131
    %v137 = vunpack.c.h.b16 %v131
    %v138 = vpack.c.b16 %v134, %v134
    %v139 = vpack.c.b16 %v135, %v135
    %v140 = vpack.c.b16 %v136, %v136
    %v141 = vpack.c.b16 %v137, %v137
    %vm142 = vcmask 39936
    %v144 = vsel %vm142, %v129, 0
    %vm146 = vcmask 1041408
    %vm147 = vcmask 1042432
    %v148 = vsel %vm146, 4294967295, 65535
    %v149 = vsel %vm147, %v148, 0
    %v151 = vand.u32 %v138, %v149
    %v154 = vand.u32 %v139, %v149
    %v157 = vand.u32 %v140, %v149
    %v160 = vand.u32 %v141, %v149
    %162 = vmatpush.bf16.msra.mxu0 0
    %163 = vmatpush.bf16.msra.mxu0 0
    %164 = vmatpush.bf16.msra.mxu0 0
    %165 = vmatpush.bf16.msra.mxu0 0
    %166 = vmatpush.bf16.msra.mxu0 0
    %167 = vmatpush.bf16.msra.mxu0 0
    %168 = vmatpush.bf16.msra.mxu0 0
    %169 = vmatpush.bf16.msra.mxu0 %v151
    %170 = vmatmul.bf16.gmra.mxu0 %v144
    %v171 = vpop.f32.mrf.mxu0
    %v172 = vadd.f32 0.0, %v171
    %v173 = vpop.f32.mrf.mxu0
    %174 = vdwg.mxu0
    %175 = vmatpush.bf16.msra.mxu0 0
    %176 = vmatpush.bf16.msra.mxu0 0
    %177 = vmatpush.bf16.msra.mxu0 0
    %178 = vmatpush.bf16.msra.mxu0 0
    %179 = vmatpush.bf16.msra.mxu0 0
    %180 = vmatpush.bf16.msra.mxu0 0
    %181 = vmatpush.bf16.msra.mxu0 0
    %182 = vmatpush.bf16.msra.mxu0 %v154
    %183 = vmatmul.bf16.gmra.mxu0 %v144
    %v184 = vpop.f32.mrf.mxu0
    %v185 = vadd.f32 0.0, %v184
    %v186 = vpop.f32.mrf.mxu0
    %187 = vdwg.mxu0
    %188 = vmatpush.bf16.msra.mxu0 0
    %189 = vmatpush.bf16.msra.mxu0 0
    %190 = vmatpush.bf16.msra.mxu0 0
    %191 = vmatpush.bf16.msra.mxu0 0
    %192 = vmatpush.bf16.msra.mxu0 0
    %193 = vmatpush.bf16.msra.mxu0 0
    %194 = vmatpush.bf16.msra.mxu0 0
    %195 = vmatpush.bf16.msra.mxu0 %v157
    %196 = vmatmul.bf16.gmra.mxu0 %v144
    %v197 = vpop.f32.mrf.mxu0
    %v198 = vadd.f32 0.0, %v197
    %v199 = vpop.f32.mrf.mxu0
    %200 = vdwg.mxu0
    %201 = vmatpush.bf16.msra.mxu0 0
    %202 = vmatpush.bf16.msra.mxu0 0
    %203 = vmatpush.bf16.msra.mxu0 0
    %204 = vmatpush.bf16.msra.mxu0 0
    %205 = vmatpush.bf16.msra.mxu0 0
    %206 = vmatpush.bf16.msra.mxu0 0
    %207 = vmatpush.bf16.msra.mxu0 0
    %208 = vmatpush.bf16.msra.mxu0 %v160
    %209 = vmatmul.bf16.gmra.mxu0 %v144
    %v210 = vpop.f32.mrf.mxu0
    %v211 = vadd.f32 0.0, %v210
    %v212 = vpop.f32.mrf.mxu0
    %213 = vdwg.mxu0
    %v214 = vpack.c.bf16 %v185, %v172
    %v215 = vpack.c.bf16 %v211, %v198
    %v216 = vld [vmem:[%s4] sm:$0xf]
    %v217 = vld [vmem:[%s4 + $0x4] sm:$0xf]
    %v218 = vld [vmem:[%s4 + $0x8] sm:$0xf]
    %v219 = vld [vmem:[%s4 + $0xc] sm:$0xf]
    %v220 = vld [vmem:[%s4 + $0x10] sm:$0xf]
    %v221 = vld [vmem:[%s4 + $0x14] sm:$0xf]
    %v222 = vld [vmem:[%s4 + $0x18] sm:$0xf]
    %v223 = vld [vmem:[%s4 + $0x1c] sm:$0xf]
    %v224 = vld [vmem:[%s4 + $0x20] sm:$0xf]
    %v225 = vld [vmem:[%s4 + $0x24] sm:$0xf]
    %v226 = vld [vmem:[%s4 + $0x28] sm:$0xf]
    %v227 = vld [vmem:[%s4 + $0x2c] sm:$0xf]
    %v228 = vld [vmem:[%s4 + $0x30] sm:$0xf]
    %v229 = vld [vmem:[%s4 + $0x34] sm:$0xf]
    %v230 = vld [vmem:[%s4 + $0x38] sm:$0xf]
    %v231 = vld [vmem:[%s4 + $0x3c] sm:$0xf]
    %v232 = vld [vmem:[%s4 + $0x40] sm:$0xf]
    %v233 = vld [vmem:[%s4 + $0x44] sm:$0xf]
    %v234 = vld [vmem:[%s4 + $0x48] sm:$0xf]
    %v235 = vld [vmem:[%s4 + $0x4c] sm:$0xf]
    %v236 = vld [vmem:[%s4 + $0x50] sm:$0xf]
    %v237 = vld [vmem:[%s4 + $0x54] sm:$0xf]
    %v238 = vld [vmem:[%s4 + $0x58] sm:$0xf]
    %v239 = vld [vmem:[%s4 + $0x5c] sm:$0xf]
    %v240 = vld [vmem:[%s4 + $0x60] sm:$0xf]
    %v241 = vld [vmem:[%s4 + $0x64] sm:$0xf]
    %v242 = vld [vmem:[%s4 + $0x68] sm:$0xf]
    %v243 = vld [vmem:[%s4 + $0x6c] sm:$0xf]
    %v244 = vld [vmem:[%s4 + $0x70] sm:$0xf]
    %v245 = vld [vmem:[%s4 + $0x74] sm:$0xf]
    %v246 = vld [vmem:[%s4 + $0x78] sm:$0xf]
    %v247 = vld [vmem:[%s4 + $0x7c] sm:$0xf]
    %v248 = vld [vmem:[%s4 + $0x80] sm:$0xf]
    %v249 = vld [vmem:[%s4 + $0x84] sm:$0xf]
    %v250 = vld [vmem:[%s4 + $0x88] sm:$0xf]
    %v251 = vld [vmem:[%s4 + $0x8c] sm:$0xf]
    %v252 = vld [vmem:[%s4 + $0x90] sm:$0xf]
    %v253 = vld [vmem:[%s4 + $0x94] sm:$0xf]
    %v254 = vld [vmem:[%s4 + $0x98] sm:$0xf]
    %v255 = vld [vmem:[%s4 + $0x9c] sm:$0xf]
    %v256 = vld [vmem:[%s4 + $0xa0] sm:$0xf]
    %v257 = vld [vmem:[%s4 + $0xa4] sm:$0xf]
    %v258 = vld [vmem:[%s4 + $0xa8] sm:$0xf]
    %v259 = vld [vmem:[%s4 + $0xac] sm:$0xf]
    %v260 = vld [vmem:[%s4 + $0xb0] sm:$0xf]
    %v261 = vld [vmem:[%s4 + $0xb4] sm:$0xf]
    %v262 = vld [vmem:[%s4 + $0xb8] sm:$0xf]
    %v263 = vld [vmem:[%s4 + $0xbc] sm:$0xf]
    %v264 = vld [vmem:[%s4 + $0xc0] sm:$0xf]
    %v265 = vld [vmem:[%s4 + $0xc4] sm:$0xf]
    %v266 = vld [vmem:[%s4 + $0xc8] sm:$0xf]
    %v267 = vld [vmem:[%s4 + $0xcc] sm:$0xf]
    %v268 = vld [vmem:[%s4 + $0xd0] sm:$0xf]
    %v269 = vld [vmem:[%s4 + $0xd4] sm:$0xf]
    %v270 = vld [vmem:[%s4 + $0xd8] sm:$0xf]
    %v271 = vld [vmem:[%s4 + $0xdc] sm:$0xf]
    %v272 = vld [vmem:[%s4 + $0xe0] sm:$0xf]
    %v273 = vld [vmem:[%s4 + $0xe4] sm:$0xf]
    %v274 = vld [vmem:[%s4 + $0xe8] sm:$0xf]
    %v275 = vld [vmem:[%s4 + $0xec] sm:$0xf]
    %v276 = vld [vmem:[%s4 + $0xf0] sm:$0xf]
    %v277 = vld [vmem:[%s4 + $0xf4] sm:$0xf]
    %v278 = vld [vmem:[%s4 + $0xf8] sm:$0xf]
    %v279 = vld [vmem:[%s4 + $0xfc] sm:$0xf]
    %v282 = vunpack.c.l.b16 %v214
    %v283 = vunpack.c.h.b16 %v214
    %v284 = vunpack.c.l.b16 %v215
    %v285 = vunpack.c.h.b16 %v215
    %v286 = vpack.c.b16 %v282, %v282
    %v287 = vpack.c.b16 %v283, %v283
    %v288 = vpack.c.b16 %v284, %v284
    %v289 = vpack.c.b16 %v285, %v285
    %v358 = vunpack.c.l.b16 %v216
    %v359 = vunpack.c.l.b16 %v217
    %v360 = vunpack.c.l.b16 %v218
    %v361 = vunpack.c.l.b16 %v219
    %v362 = vunpack.c.l.b16 %v220
    %v363 = vunpack.c.l.b16 %v221
    %v364 = vunpack.c.l.b16 %v222
    %v365 = vunpack.c.l.b16 %v223
    %v366 = vunpack.c.l.b16 %v224
    %v367 = vunpack.c.l.b16 %v225
    %v368 = vunpack.c.l.b16 %v226
    %v369 = vunpack.c.l.b16 %v227
    %v370 = vunpack.c.l.b16 %v228
    %v371 = vunpack.c.l.b16 %v229
    %v372 = vunpack.c.l.b16 %v230
    %v373 = vunpack.c.l.b16 %v231
    %v374 = vunpack.c.l.b16 %v232
    %v375 = vunpack.c.l.b16 %v233
    %v376 = vunpack.c.l.b16 %v234
    %v377 = vunpack.c.l.b16 %v235
    %v378 = vunpack.c.l.b16 %v236
    %v379 = vunpack.c.l.b16 %v237
    %v380 = vunpack.c.l.b16 %v238
    %v381 = vunpack.c.l.b16 %v239
    %v382 = vunpack.c.l.b16 %v240
    %v383 = vunpack.c.l.b16 %v241
    %v384 = vunpack.c.l.b16 %v242
    %v385 = vunpack.c.l.b16 %v243
    %v386 = vunpack.c.l.b16 %v244
    %v387 = vunpack.c.l.b16 %v245
    %v388 = vunpack.c.l.b16 %v246
    %v389 = vunpack.c.l.b16 %v247
    %v390 = vunpack.c.l.b16 %v248
    %v391 = vunpack.c.l.b16 %v249
    %v392 = vunpack.c.l.b16 %v250
    %v393 = vunpack.c.l.b16 %v251
    %v394 = vunpack.c.l.b16 %v252
    %v395 = vunpack.c.l.b16 %v253
    %v396 = vunpack.c.l.b16 %v254
    %v397 = vunpack.c.l.b16 %v255
    %v398 = vunpack.c.l.b16 %v256
    %v399 = vunpack.c.l.b16 %v257
    %v400 = vunpack.c.l.b16 %v258
    %v401 = vunpack.c.l.b16 %v259
    %v402 = vunpack.c.l.b16 %v260
    %v403 = vunpack.c.l.b16 %v261
    %v404 = vunpack.c.l.b16 %v262
    %v405 = vunpack.c.l.b16 %v263
    %v406 = vunpack.c.l.b16 %v264
    %v407 = vunpack.c.l.b16 %v265
    %v408 = vunpack.c.l.b16 %v266
    %v409 = vunpack.c.l.b16 %v267
    %v410 = vunpack.c.l.b16 %v268
    %v411 = vunpack.c.l.b16 %v269
    %v412 = vunpack.c.l.b16 %v270
    %v413 = vunpack.c.l.b16 %v271
    %v414 = vunpack.c.l.b16 %v272
    %v415 = vunpack.c.l.b16 %v273
    %v416 = vunpack.c.l.b16 %v274
    %v417 = vunpack.c.l.b16 %v275
    %v418 = vunpack.c.l.b16 %v276
    %v419 = vunpack.c.l.b16 %v277
    %v420 = vunpack.c.l.b16 %v278
    %v421 = vunpack.c.l.b16 %v279
    %v422 = vpack.c.b16 %v359, %v358
    %v423 = vpack.c.b16 %v361, %v360
    %v424 = vpack.c.b16 %v363, %v362
    %v425 = vpack.c.b16 %v365, %v364
    %v426 = vpack.c.b16 %v367, %v366
    %v427 = vpack.c.b16 %v369, %v368
    %v428 = vpack.c.b16 %v371, %v370
    %v429 = vpack.c.b16 %v373, %v372
    %v430 = vpack.c.b16 %v375, %v374
    %v431 = vpack.c.b16 %v377, %v376
    %v432 = vpack.c.b16 %v379, %v378
    %v433 = vpack.c.b16 %v381, %v380
    %v434 = vpack.c.b16 %v383, %v382
    %v435 = vpack.c.b16 %v385, %v384
    %v436 = vpack.c.b16 %v387, %v386
    %v437 = vpack.c.b16 %v389, %v388
    %v438 = vpack.c.b16 %v391, %v390
    %v439 = vpack.c.b16 %v393, %v392
    %v440 = vpack.c.b16 %v395, %v394
    %v441 = vpack.c.b16 %v397, %v396
    %v442 = vpack.c.b16 %v399, %v398
    %v443 = vpack.c.b16 %v401, %v400
    %v444 = vpack.c.b16 %v403, %v402
    %v445 = vpack.c.b16 %v405, %v404
    %v446 = vpack.c.b16 %v407, %v406
    %v447 = vpack.c.b16 %v409, %v408
    %v448 = vpack.c.b16 %v411, %v410
    %v449 = vpack.c.b16 %v413, %v412
    %v450 = vpack.c.b16 %v415, %v414
    %v451 = vpack.c.b16 %v417, %v416
    %v452 = vpack.c.b16 %v419, %v418
    %v453 = vpack.c.b16 %v421, %v420
    %486 = vmatpush.bf16.msra.mxu0 %v429
    %487 = vmatpush.bf16.msra.mxu0 %v428
    %488 = vmatpush.bf16.msra.mxu0 %v427
    %489 = vmatpush.bf16.msra.mxu0 %v426
    %490 = vmatpush.bf16.msra.mxu0 %v425
    %491 = vmatpush.bf16.msra.mxu0 %v424
    %492 = vmatpush.bf16.msra.mxu0 %v423
    %493 = vmatpush.bf16.msra.mxu0 %v422
    %494 = vmatmul.bf16.gmra.mxu0 %v286
    %v495 = vpop.f32.mrf.mxu0
    %v496 = vadd.f32 0.0, %v495
    %v497 = vpop.f32.mrf.mxu0
    %498 = vdwg.mxu0
    %499 = vmatpush.bf16.msra.mxu0 %v437
    %500 = vmatpush.bf16.msra.mxu0 %v436
    %501 = vmatpush.bf16.msra.mxu0 %v435
    %502 = vmatpush.bf16.msra.mxu0 %v434
    %503 = vmatpush.bf16.msra.mxu0 %v433
    %504 = vmatpush.bf16.msra.mxu0 %v432
    %505 = vmatpush.bf16.msra.mxu0 %v431
    %506 = vmatpush.bf16.msra.mxu0 %v430
    %507 = vmatmul.bf16.gmra.mxu0 %v287
    %v508 = vpop.f32.mrf.mxu0
    %v509 = vadd.f32 %v496, %v508
    %v510 = vpop.f32.mrf.mxu0
    %511 = vdwg.mxu0
    %512 = vmatpush.bf16.msra.mxu0 %v445
    %513 = vmatpush.bf16.msra.mxu0 %v444
    %514 = vmatpush.bf16.msra.mxu0 %v443
    %515 = vmatpush.bf16.msra.mxu0 %v442
    %516 = vmatpush.bf16.msra.mxu0 %v441
    %517 = vmatpush.bf16.msra.mxu0 %v440
    %518 = vmatpush.bf16.msra.mxu0 %v439
    %519 = vmatpush.bf16.msra.mxu0 %v438
    %520 = vmatmul.bf16.gmra.mxu0 %v288
    %v521 = vpop.f32.mrf.mxu0
    %v522 = vadd.f32 %v509, %v521
    %v523 = vpop.f32.mrf.mxu0
    %524 = vdwg.mxu0
    %525 = vmatpush.bf16.msra.mxu0 %v453
    %526 = vmatpush.bf16.msra.mxu0 %v452
    %527 = vmatpush.bf16.msra.mxu0 %v451
    %528 = vmatpush.bf16.msra.mxu0 %v450
    %529 = vmatpush.bf16.msra.mxu0 %v449
    %530 = vmatpush.bf16.msra.mxu0 %v448
    %531 = vmatpush.bf16.msra.mxu0 %v447
    %532 = vmatpush.bf16.msra.mxu0 %v446
    %533 = vmatmul.bf16.gmra.mxu0 %v289
    %v534 = vpop.f32.mrf.mxu0
    %v535 = vadd.f32 %v522, %v534
    %v536 = vpop.f32.mrf.mxu0
    %537 = vdwg.mxu0
    %539 = vrot.lane.b32.xlu0 %v535, 124
    %v540 = vpop.permute.xlu0 %539
    %542 = vxpose.xlu0.b32.start [1/16] %v540, 128
    %543 = vxpose.xlu0.b32.cont [2/16] 0.0, 128
    %544 = vxpose.xlu0.b32.cont [3/16] 0.0, 128
    %545 = vxpose.xlu0.b32.cont [4/16] 0.0, 128
    %546 = vxpose.xlu0.b32.cont [5/16] 0.0, 128
    %547 = vxpose.xlu0.b32.cont [6/16] 0.0, 128
    %548 = vxpose.xlu0.b32.cont [7/16] 0.0, 128
    %549 = vxpose.xlu0.b32.cont [8/16] 0.0, 128
    %550 = vxpose.xlu0.b32.cont [9/16] 0.0, 128
    %551 = vxpose.xlu0.b32.cont [10/16] 0.0, 128
    %552 = vxpose.xlu0.b32.cont [11/16] 0.0, 128
    %553 = vxpose.xlu0.b32.cont [12/16] 0.0, 128
    %554 = vxpose.xlu0.b32.cont [13/16] 0.0, 128
    %555 = vxpose.xlu0.b32.cont [14/16] 0.0, 128
    %556 = vxpose.xlu0.b32.cont [15/16] 0.0, 128
    %557 = vxpose.xlu0.b32.end [16/16] 0.0, 128
    %v558 = vpop.trf.xlu0
    %v559 = vpop.trf.xlu0
    %v560 = vpop.trf.xlu0
    %v561 = vpop.trf.xlu0
    %v562 = vpop.trf.xlu0
    %v563 = vpop.trf.xlu0
    %v564 = vpop.trf.xlu0
    %v565 = vpop.trf.xlu0
    %v566 = vpop.trf.xlu0
    %v567 = vpop.trf.xlu0
    %v568 = vpop.trf.xlu0
    %v569 = vpop.trf.xlu0
    %v570 = vpop.trf.xlu0
    %v571 = vpop.trf.xlu0
    %v572 = vpop.trf.xlu0
    %v573 = vpop.trf.xlu0
    %v574 = vld [vmem:[%s1] sm:$0x3]
    %v575 = vunpack.c.l.bf16 %v574
    %576 = vset.pattern.permute.xlu0 0
    %577 = vperm.xlu0 %576, %v535
    %v578 = vpop.permute.xlu0 %577
    %v580 = vperm.slane %v558, 0
    %v581 = vadd.f32 %v578, %v580
    %v582 = vmul.f32 %v581, 0.2
    %v583 = vmax.f32 %v581, %v582
    %v584 = vadd.f32 %v583, %v575
    %vm585 = vcmask 27648
    %v586 = vsel %vm585, %v584, -inf
    %587 = vmax.xlane.f32.xlu0 %v586
    %v588 = vpop.xlane.xlu0 %587
    %v589 = vsub.f32 %v584, %v588
    %v590 = vmul.f32 %v589, 1.442695
    %v591 = vpow.pop %v590
    %v592 = vsel %vm585, %v591, 0.0
    %593 = vadd.xlane.f32.xlu0 %v592
    %v594 = vpop.xlane.xlu0 %593
    %v595 = vrcp.pop %v594
    %v596 = vmul.f32 %v591, %v595
    %v597 = vpack.c.bf16 %v596, %v596
    %vm598 = vcmask 31744
    %v600 = vsel %vm598, %v597, 0
    %v603 = vsel %vm146, %v214, 0
    %605 = vmatpush.bf16.msra.mxu0 0
    %606 = vmatpush.bf16.msra.mxu0 0
    %607 = vmatpush.bf16.msra.mxu0 0
    %608 = vmatpush.bf16.msra.mxu0 0
    %609 = vmatpush.bf16.msra.mxu0 0
    %610 = vmatpush.bf16.msra.mxu0 0
    %611 = vmatpush.bf16.msra.mxu0 0
    %612 = vmatpush.bf16.msra.mxu0 %v603
    %613 = vmatmul.bf16.gmra.mxu0 %v600
    %v614 = vpop.f32.mrf.mxu0
    %v615 = vadd.f32 0.0, %v614
    %v616 = vpop.f32.mrf.mxu0
    %617 = vdwg.mxu0
    %v618 = vpack.c.bf16 %v615, %v615
    %619 = vst [vmem:[#allocation2] sm:$0x3] %v618
    %620 = vset.pattern.permute.xlu0 1
    %621 = vperm.xlu0 %620, %v535
    %v622 = vpop.permute.xlu0 %621
    %v624 = vperm.slane %v558, 1
    %v625 = vadd.f32 %v622, %v624
    %v626 = vmul.f32 %v625, 0.2
    %v627 = vmax.f32 %v625, %v626
    %v628 = vadd.f32 %v627, %v575
    %v629 = vsel %vm585, %v628, -inf
    %630 = vmax.xlane.f32.xlu0 %v629
    %v631 = vpop.xlane.xlu0 %630
    %v632 = vsub.f32 %v628, %v631
    %v633 = vmul.f32 %v632, 1.442695
    %v634 = vpow.pop %v633
    %v635 = vsel %vm585, %v634, 0.0
    %636 = vadd.xlane.f32.xlu0 %v635
    %v637 = vpop.xlane.xlu0 %636
    %v638 = vrcp.pop %v637
    %v639 = vmul.f32 %v634, %v638
    %v640 = vpack.c.bf16 %v639, %v639
    %v642 = vsel %vm598, %v640, 0
    %v645 = vsel %vm146, %v287, 0
    %647 = vmatpush.bf16.msra.mxu0 0
    %648 = vmatpush.bf16.msra.mxu0 0
    %649 = vmatpush.bf16.msra.mxu0 0
    %650 = vmatpush.bf16.msra.mxu0 0
    %651 = vmatpush.bf16.msra.mxu0 0
    %652 = vmatpush.bf16.msra.mxu0 0
    %653 = vmatpush.bf16.msra.mxu0 0
    %654 = vmatpush.bf16.msra.mxu0 %v645
    %655 = vmatmul.bf16.gmra.mxu0 %v642
    %v656 = vpop.f32.mrf.mxu0
    %v657 = vadd.f32 0.0, %v656
    %v658 = vpop.f32.mrf.mxu0
    %659 = vdwg.mxu0
    %v660 = vpack.c.bf16 %v657, %v657
    %661 = vst [vmem:[#allocation2 + $0x2] sm:$0x3] %v660
    %662 = vset.pattern.permute.xlu0 2
    %663 = vperm.xlu0 %662, %v535
    %v664 = vpop.permute.xlu0 %663
    %v666 = vperm.slane %v558, 2
    %v667 = vadd.f32 %v664, %v666
    %v668 = vmul.f32 %v667, 0.2
    %v669 = vmax.f32 %v667, %v668
    %v670 = vadd.f32 %v669, %v575
    %v671 = vsel %vm585, %v670, -inf
    %672 = vmax.xlane.f32.xlu0 %v671
    %v673 = vpop.xlane.xlu0 %672
    %v674 = vsub.f32 %v670, %v673
    %v675 = vmul.f32 %v674, 1.442695
    %v676 = vpow.pop %v675
    %v677 = vsel %vm585, %v676, 0.0
    %678 = vadd.xlane.f32.xlu0 %v677
    %v679 = vpop.xlane.xlu0 %678
    %v680 = vrcp.pop %v679
    %v681 = vmul.f32 %v676, %v680
    %v682 = vpack.c.bf16 %v681, %v681
    %v684 = vsel %vm598, %v682, 0
    %v687 = vsel %vm146, %v215, 0
    %689 = vmatpush.bf16.msra.mxu0 0
    %690 = vmatpush.bf16.msra.mxu0 0
    %691 = vmatpush.bf16.msra.mxu0 0
    %692 = vmatpush.bf16.msra.mxu0 0
    %693 = vmatpush.bf16.msra.mxu0 0
    %694 = vmatpush.bf16.msra.mxu0 0
    %695 = vmatpush.bf16.msra.mxu0 0
    %696 = vmatpush.bf16.msra.mxu0 %v687
    %697 = vmatmul.bf16.gmra.mxu0 %v684
    %v698 = vpop.f32.mrf.mxu0
    %v699 = vadd.f32 0.0, %v698
    %v700 = vpop.f32.mrf.mxu0
    %701 = vdwg.mxu0
    %v702 = vpack.c.bf16 %v699, %v699
    %703 = vst [vmem:[#allocation2 + $0x4] sm:$0x3] %v702
    %704 = vset.pattern.permute.xlu0 3
    %705 = vperm.xlu0 %704, %v535
    %v706 = vpop.permute.xlu0 %705
    %v708 = vperm.slane %v558, 3
    %v709 = vadd.f32 %v706, %v708
    %v710 = vmul.f32 %v709, 0.2
    %v711 = vmax.f32 %v709, %v710
    %v712 = vadd.f32 %v711, %v575
    %v713 = vsel %vm585, %v712, -inf
    %714 = vmax.xlane.f32.xlu0 %v713
    %v715 = vpop.xlane.xlu0 %714
    %v716 = vsub.f32 %v712, %v715
    %v717 = vmul.f32 %v716, 1.442695
    %v718 = vpow.pop %v717
    %v719 = vsel %vm585, %v718, 0.0
    %720 = vadd.xlane.f32.xlu0 %v719
    %v721 = vpop.xlane.xlu0 %720
    %v722 = vrcp.pop %v721
    %v723 = vmul.f32 %v718, %v722
    %v724 = vpack.c.bf16 %v723, %v723
    %v726 = vsel %vm598, %v724, 0
    %v729 = vsel %vm146, %v289, 0
    %731 = vmatpush.bf16.msra.mxu0 0
    %732 = vmatpush.bf16.msra.mxu0 0
    %733 = vmatpush.bf16.msra.mxu0 0
    %734 = vmatpush.bf16.msra.mxu0 0
    %735 = vmatpush.bf16.msra.mxu0 0
    %736 = vmatpush.bf16.msra.mxu0 0
    %737 = vmatpush.bf16.msra.mxu0 0
    %738 = vmatpush.bf16.msra.mxu0 %v729
    %739 = vmatmul.bf16.gmra.mxu0 %v726
    %v740 = vpop.f32.mrf.mxu0
    %v741 = vadd.f32 0.0, %v740
    %v742 = vpop.f32.mrf.mxu0
    %743 = vdwg.mxu0
    %v744 = vpack.c.bf16 %v741, %v741
    %745 = vst [vmem:[#allocation2 + $0x6] sm:$0x3] %v744
    %v746 = vld [vmem:[#allocation3] sm:$0x1]
    %v747 = vld [vmem:[#allocation2] sm:$0xff]
    %v749 = vperm.slane %v122, 0
    %v750 = vperm.slane %v122, 1
    %v751 = vperm.slane %v122, 2
    %v752 = vperm.slane %v122, 3
    %758 = vst [vmem:[#allocation1] ss:$4 sm:$0xff] %v747
    %v759 = vld.sshfl [vmem:[#allocation1] sm:$0xff pattern:$0x73625140]
    %v760 = vld.sshfl [vmem:[#allocation1 + $0x8] sm:$0xff pattern:$0x73625140]
    %v761 = vld.sshfl [vmem:[#allocation1 + $0x10] sm:$0xff pattern:$0x73625140]
    %v762 = vld.sshfl [vmem:[#allocation1 + $0x18] sm:$0xff pattern:$0x73625140]
    %v764 = vsel %vm598, %v746, 0
    %v766 = vsel %vm146, %v759, 0
    %v768 = vsel %vm146, %v760, 0
    %v770 = vsel %vm146, %v761, 0
    %v772 = vsel %vm146, %v762, 0
    %774 = vmatpush.bf16.msra.mxu0 0
    %775 = vmatpush.bf16.msra.mxu0 0
    %776 = vmatpush.bf16.msra.mxu0 0
    %777 = vmatpush.bf16.msra.mxu0 0
    %778 = vmatpush.bf16.msra.mxu0 0
    %779 = vmatpush.bf16.msra.mxu0 0
    %780 = vmatpush.bf16.msra.mxu0 0
    %781 = vmatpush.bf16.msra.mxu0 %v766
    %782 = vmatmul.bf16.gmra.mxu0 %v764
    %v783 = vpop.f32.mrf.mxu0
    %v784 = vadd.f32 %v749, %v783
    %v785 = vpop.f32.mrf.mxu0
    %786 = vdwg.mxu0
    %787 = vmatpush.bf16.msra.mxu0 0
    %788 = vmatpush.bf16.msra.mxu0 0
    %789 = vmatpush.bf16.msra.mxu0 0
    %790 = vmatpush.bf16.msra.mxu0 0
    %791 = vmatpush.bf16.msra.mxu0 0
    %792 = vmatpush.bf16.msra.mxu0 0
    %793 = vmatpush.bf16.msra.mxu0 0
    %794 = vmatpush.bf16.msra.mxu0 %v768
    %795 = vmatmul.bf16.gmra.mxu0 %v764
    %v796 = vpop.f32.mrf.mxu0
    %v797 = vadd.f32 %v750, %v796
    %v798 = vpop.f32.mrf.mxu0
    %799 = vdwg.mxu0
    %800 = vmatpush.bf16.msra.mxu0 0
    %801 = vmatpush.bf16.msra.mxu0 0
    %802 = vmatpush.bf16.msra.mxu0 0
    %803 = vmatpush.bf16.msra.mxu0 0
    %804 = vmatpush.bf16.msra.mxu0 0
    %805 = vmatpush.bf16.msra.mxu0 0
    %806 = vmatpush.bf16.msra.mxu0 0
    %807 = vmatpush.bf16.msra.mxu0 %v770
    %808 = vmatmul.bf16.gmra.mxu0 %v764
    %v809 = vpop.f32.mrf.mxu0
    %v810 = vadd.f32 %v751, %v809
    %v811 = vpop.f32.mrf.mxu0
    %812 = vdwg.mxu0
    %813 = vmatpush.bf16.msra.mxu0 0
    %814 = vmatpush.bf16.msra.mxu0 0
    %815 = vmatpush.bf16.msra.mxu0 0
    %816 = vmatpush.bf16.msra.mxu0 0
    %817 = vmatpush.bf16.msra.mxu0 0
    %818 = vmatpush.bf16.msra.mxu0 0
    %819 = vmatpush.bf16.msra.mxu0 0
    %820 = vmatpush.bf16.msra.mxu0 %v772
    %821 = vmatmul.bf16.gmra.mxu0 %v764
    %v822 = vpop.f32.mrf.mxu0
    %v823 = vadd.f32 %v752, %v822
    %v824 = vpop.f32.mrf.mxu0
    %825 = vdwg.mxu0
    %v826 = vpack.c.bf16 %v784, %v784
    %v827 = vpack.c.bf16 %v797, %v797
    %v828 = vpack.c.bf16 %v810, %v810
    %v829 = vpack.c.bf16 %v823, %v823
    %v830 = vld [vmem:[%s5] sm:$0xff]
    %v831 = vld [vmem:[%s5 + $0x8] sm:$0xff]
    %v832 = vld [vmem:[%s5 + $0x10] sm:$0xff]
    %v833 = vld [vmem:[%s5 + $0x18] sm:$0xff]
    %v834 = vld [vmem:[%s5 + $0x20] sm:$0xff]
    %v835 = vld [vmem:[%s5 + $0x28] sm:$0xff]
    %v836 = vld [vmem:[%s5 + $0x30] sm:$0xff]
    %v837 = vld [vmem:[%s5 + $0x38] sm:$0xff]
    %v838 = vld [vmem:[%s5 + $0x40] sm:$0xff]
    %v839 = vld [vmem:[%s5 + $0x48] sm:$0xff]
    %v840 = vld [vmem:[%s5 + $0x50] sm:$0xff]
    %v841 = vld [vmem:[%s5 + $0x58] sm:$0xff]
    %v842 = vld [vmem:[%s5 + $0x60] sm:$0xff]
    %v843 = vld [vmem:[%s5 + $0x68] sm:$0xff]
    %v844 = vld [vmem:[%s5 + $0x70] sm:$0xff]
    %v845 = vld [vmem:[%s5 + $0x78] sm:$0xff]
    %v846 = vld [vmem:[%s5 + $0x80] sm:$0xff]
    %v847 = vld [vmem:[%s5 + $0x88] sm:$0xff]
    %v848 = vld [vmem:[%s5 + $0x90] sm:$0xff]
    %v849 = vld [vmem:[%s5 + $0x98] sm:$0xff]
    %v850 = vld [vmem:[%s5 + $0xa0] sm:$0xff]
    %v851 = vld [vmem:[%s5 + $0xa8] sm:$0xff]
    %v852 = vld [vmem:[%s5 + $0xb0] sm:$0xff]
    %v853 = vld [vmem:[%s5 + $0xb8] sm:$0xff]
    %v854 = vld [vmem:[%s5 + $0xc0] sm:$0xff]
    %v855 = vld [vmem:[%s5 + $0xc8] sm:$0xff]
    %v856 = vld [vmem:[%s5 + $0xd0] sm:$0xff]
    %v857 = vld [vmem:[%s5 + $0xd8] sm:$0xff]
    %v858 = vld [vmem:[%s5 + $0xe0] sm:$0xff]
    %v859 = vld [vmem:[%s5 + $0xe8] sm:$0xff]
    %v860 = vld [vmem:[%s5 + $0xf0] sm:$0xff]
    %v861 = vld [vmem:[%s5 + $0xf8] sm:$0xff]
    %v862 = vld [vmem:[%s5 + $0x100] sm:$0xff]
    %v863 = vld [vmem:[%s5 + $0x108] sm:$0xff]
    %v864 = vld [vmem:[%s5 + $0x110] sm:$0xff]
    %v865 = vld [vmem:[%s5 + $0x118] sm:$0xff]
    %v866 = vld [vmem:[%s5 + $0x120] sm:$0xff]
    %v867 = vld [vmem:[%s5 + $0x128] sm:$0xff]
    %v868 = vld [vmem:[%s5 + $0x130] sm:$0xff]
    %v869 = vld [vmem:[%s5 + $0x138] sm:$0xff]
    %v870 = vld [vmem:[%s5 + $0x140] sm:$0xff]
    %v871 = vld [vmem:[%s5 + $0x148] sm:$0xff]
    %v872 = vld [vmem:[%s5 + $0x150] sm:$0xff]
    %v873 = vld [vmem:[%s5 + $0x158] sm:$0xff]
    %v874 = vld [vmem:[%s5 + $0x160] sm:$0xff]
    %v875 = vld [vmem:[%s5 + $0x168] sm:$0xff]
    %v876 = vld [vmem:[%s5 + $0x170] sm:$0xff]
    %v877 = vld [vmem:[%s5 + $0x178] sm:$0xff]
    %v878 = vld [vmem:[%s5 + $0x180] sm:$0xff]
    %v879 = vld [vmem:[%s5 + $0x188] sm:$0xff]
    %v880 = vld [vmem:[%s5 + $0x190] sm:$0xff]
    %v881 = vld [vmem:[%s5 + $0x198] sm:$0xff]
    %v882 = vld [vmem:[%s5 + $0x1a0] sm:$0xff]
    %v883 = vld [vmem:[%s5 + $0x1a8] sm:$0xff]
    %v884 = vld [vmem:[%s5 + $0x1b0] sm:$0xff]
    %v885 = vld [vmem:[%s5 + $0x1b8] sm:$0xff]
    %v886 = vld [vmem:[%s5 + $0x1c0] sm:$0xff]
    %v887 = vld [vmem:[%s5 + $0x1c8] sm:$0xff]
    %v888 = vld [vmem:[%s5 + $0x1d0] sm:$0xff]
    %v889 = vld [vmem:[%s5 + $0x1d8] sm:$0xff]
    %v890 = vld [vmem:[%s5 + $0x1e0] sm:$0xff]
    %v891 = vld [vmem:[%s5 + $0x1e8] sm:$0xff]
    %v892 = vld [vmem:[%s5 + $0x1f0] sm:$0xff]
    %v893 = vld [vmem:[%s5 + $0x1f8] sm:$0xff]
    %v895 = vperm.slane %v123, 0
    %v896 = vperm.slane %v123, 1
    %v963 = vunpack.c.l.b16 %v830
    %v964 = vunpack.c.h.b16 %v830
    %v965 = vunpack.c.l.b16 %v831
    %v966 = vunpack.c.h.b16 %v831
    %v967 = vunpack.c.l.b16 %v832
    %v968 = vunpack.c.h.b16 %v832
    %v969 = vunpack.c.l.b16 %v833
    %v970 = vunpack.c.h.b16 %v833
    %v971 = vunpack.c.l.b16 %v834
    %v972 = vunpack.c.h.b16 %v834
    %v973 = vunpack.c.l.b16 %v835
    %v974 = vunpack.c.h.b16 %v835
    %v975 = vunpack.c.l.b16 %v836
    %v976 = vunpack.c.h.b16 %v836
    %v977 = vunpack.c.l.b16 %v837
    %v978 = vunpack.c.h.b16 %v837
    %v979 = vunpack.c.l.b16 %v838
    %v980 = vunpack.c.h.b16 %v838
    %v981 = vunpack.c.l.b16 %v839
    %v982 = vunpack.c.h.b16 %v839
    %v983 = vunpack.c.l.b16 %v840
    %v984 = vunpack.c.h.b16 %v840
    %v985 = vunpack.c.l.b16 %v841
    %v986 = vunpack.c.h.b16 %v841
    %v987 = vunpack.c.l.b16 %v842
    %v988 = vunpack.c.h.b16 %v842
    %v989 = vunpack.c.l.b16 %v843
    %v990 = vunpack.c.h.b16 %v843
    %v991 = vunpack.c.l.b16 %v844
    %v992 = vunpack.c.h.b16 %v844
    %v993 = vunpack.c.l.b16 %v845
    %v994 = vunpack.c.h.b16 %v845
    %v995 = vunpack.c.l.b16 %v846
    %v996 = vunpack.c.h.b16 %v846
    %v997 = vunpack.c.l.b16 %v847
    %v998 = vunpack.c.h.b16 %v847
    %v999 = vunpack.c.l.b16 %v848
    %v1000 = vunpack.c.h.b16 %v848
    %v1001 = vunpack.c.l.b16 %v849
    %v1002 = vunpack.c.h.b16 %v849
    %v1003 = vunpack.c.l.b16 %v850
    %v1004 = vunpack.c.h.b16 %v850
    %v1005 = vunpack.c.l.b16 %v851
    %v1006 = vunpack.c.h.b16 %v851
    %v1007 = vunpack.c.l.b16 %v852
    %v1008 = vunpack.c.h.b16 %v852
    %v1009 = vunpack.c.l.b16 %v853
    %v1010 = vunpack.c.h.b16 %v853
    %v1011 = vunpack.c.l.b16 %v854
    %v1012 = vunpack.c.h.b16 %v854
    %v1013 = vunpack.c.l.b16 %v855
    %v1014 = vunpack.c.h.b16 %v855
    %v1015 = vunpack.c.l.b16 %v856
    %v1016 = vunpack.c.h.b16 %v856
    %v1017 = vunpack.c.l.b16 %v857
    %v1018 = vunpack.c.h.b16 %v857
    %v1019 = vunpack.c.l.b16 %v858
    %v1020 = vunpack.c.h.b16 %v858
    %v1021 = vunpack.c.l.b16 %v859
    %v1022 = vunpack.c.h.b16 %v859
    %v1023 = vunpack.c.l.b16 %v860
    %v1024 = vunpack.c.h.b16 %v860
    %v1025 = vunpack.c.l.b16 %v861
    %v1026 = vunpack.c.h.b16 %v861
    %v1027 = vunpack.c.l.b16 %v862
    %v1028 = vunpack.c.h.b16 %v862
    %v1029 = vunpack.c.l.b16 %v863
    %v1030 = vunpack.c.h.b16 %v863
    %v1031 = vunpack.c.l.b16 %v864
    %v1032 = vunpack.c.h.b16 %v864
    %v1033 = vunpack.c.l.b16 %v865
    %v1034 = vunpack.c.h.b16 %v865
    %v1035 = vunpack.c.l.b16 %v866
    %v1036 = vunpack.c.h.b16 %v866
    %v1037 = vunpack.c.l.b16 %v867
    %v1038 = vunpack.c.h.b16 %v867
    %v1039 = vunpack.c.l.b16 %v868
    %v1040 = vunpack.c.h.b16 %v868
    %v1041 = vunpack.c.l.b16 %v869
    %v1042 = vunpack.c.h.b16 %v869
    %v1043 = vunpack.c.l.b16 %v870
    %v1044 = vunpack.c.h.b16 %v870
    %v1045 = vunpack.c.l.b16 %v871
    %v1046 = vunpack.c.h.b16 %v871
    %v1047 = vunpack.c.l.b16 %v872
    %v1048 = vunpack.c.h.b16 %v872
    %v1049 = vunpack.c.l.b16 %v873
    %v1050 = vunpack.c.h.b16 %v873
    %v1051 = vunpack.c.l.b16 %v874
    %v1052 = vunpack.c.h.b16 %v874
    %v1053 = vunpack.c.l.b16 %v875
    %v1054 = vunpack.c.h.b16 %v875
    %v1055 = vunpack.c.l.b16 %v876
    %v1056 = vunpack.c.h.b16 %v876
    %v1057 = vunpack.c.l.b16 %v877
    %v1058 = vunpack.c.h.b16 %v877
    %v1059 = vunpack.c.l.b16 %v878
    %v1060 = vunpack.c.h.b16 %v878
    %v1061 = vunpack.c.l.b16 %v879
    %v1062 = vunpack.c.h.b16 %v879
    %v1063 = vunpack.c.l.b16 %v880
    %v1064 = vunpack.c.h.b16 %v880
    %v1065 = vunpack.c.l.b16 %v881
    %v1066 = vunpack.c.h.b16 %v881
    %v1067 = vunpack.c.l.b16 %v882
    %v1068 = vunpack.c.h.b16 %v882
    %v1069 = vunpack.c.l.b16 %v883
    %v1070 = vunpack.c.h.b16 %v883
    %v1071 = vunpack.c.l.b16 %v884
    %v1072 = vunpack.c.h.b16 %v884
    %v1073 = vunpack.c.l.b16 %v885
    %v1074 = vunpack.c.h.b16 %v885
    %v1075 = vunpack.c.l.b16 %v886
    %v1076 = vunpack.c.h.b16 %v886
    %v1077 = vunpack.c.l.b16 %v887
    %v1078 = vunpack.c.h.b16 %v887
    %v1079 = vunpack.c.l.b16 %v888
    %v1080 = vunpack.c.h.b16 %v888
    %v1081 = vunpack.c.l.b16 %v889
    %v1082 = vunpack.c.h.b16 %v889
    %v1083 = vunpack.c.l.b16 %v890
    %v1084 = vunpack.c.h.b16 %v890
    %v1085 = vunpack.c.l.b16 %v891
    %v1086 = vunpack.c.h.b16 %v891
    %v1087 = vunpack.c.l.b16 %v892
    %v1088 = vunpack.c.h.b16 %v892
    %v1089 = vunpack.c.l.b16 %v893
    %v1090 = vunpack.c.h.b16 %v893
    %v1091 = vpack.c.b16 %v965, %v963
    %v1092 = vpack.c.b16 %v966, %v964
    %v1093 = vpack.c.b16 %v969, %v967
    %v1094 = vpack.c.b16 %v970, %v968
    %v1095 = vpack.c.b16 %v973, %v971
    %v1096 = vpack.c.b16 %v974, %v972
    %v1097 = vpack.c.b16 %v977, %v975
    %v1098 = vpack.c.b16 %v978, %v976
    %v1099 = vpack.c.b16 %v981, %v979
    %v1100 = vpack.c.b16 %v982, %v980
    %v1101 = vpack.c.b16 %v985, %v983
    %v1102 = vpack.c.b16 %v986, %v984
    %v1103 = vpack.c.b16 %v989, %v987
    %v1104 = vpack.c.b16 %v990, %v988
    %v1105 = vpack.c.b16 %v993, %v991
    %v1106 = vpack.c.b16 %v994, %v992
    %v1107 = vpack.c.b16 %v997, %v995
    %v1108 = vpack.c.b16 %v998, %v996
    %v1109 = vpack.c.b16 %v1001, %v999
    %v1110 = vpack.c.b16 %v1002, %v1000
    %v1111 = vpack.c.b16 %v1005, %v1003
    %v1112 = vpack.c.b16 %v1006, %v1004
    %v1113 = vpack.c.b16 %v1009, %v1007
    %v1114 = vpack.c.b16 %v1010, %v1008
    %v1115 = vpack.c.b16 %v1013, %v1011
    %v1116 = vpack.c.b16 %v1014, %v1012
    %v1117 = vpack.c.b16 %v1017, %v1015
    %v1118 = vpack.c.b16 %v1018, %v1016
    %v1119 = vpack.c.b16 %v1021, %v1019
    %v1120 = vpack.c.b16 %v1022, %v1020
    %v1121 = vpack.c.b16 %v1025, %v1023
    %v1122 = vpack.c.b16 %v1026, %v1024
    %v1123 = vpack.c.b16 %v1029, %v1027
    %v1124 = vpack.c.b16 %v1030, %v1028
    %v1125 = vpack.c.b16 %v1033, %v1031
    %v1126 = vpack.c.b16 %v1034, %v1032
    %v1127 = vpack.c.b16 %v1037, %v1035
    %v1128 = vpack.c.b16 %v1038, %v1036
    %v1129 = vpack.c.b16 %v1041, %v1039
    %v1130 = vpack.c.b16 %v1042, %v1040
    %v1131 = vpack.c.b16 %v1045, %v1043
    %v1132 = vpack.c.b16 %v1046, %v1044
    %v1133 = vpack.c.b16 %v1049, %v1047
    %v1134 = vpack.c.b16 %v1050, %v1048
    %v1135 = vpack.c.b16 %v1053, %v1051
    %v1136 = vpack.c.b16 %v1054, %v1052
    %v1137 = vpack.c.b16 %v1057, %v1055
    %v1138 = vpack.c.b16 %v1058, %v1056
    %v1139 = vpack.c.b16 %v1061, %v1059
    %v1140 = vpack.c.b16 %v1062, %v1060
    %v1141 = vpack.c.b16 %v1065, %v1063
    %v1142 = vpack.c.b16 %v1066, %v1064
    %v1143 = vpack.c.b16 %v1069, %v1067
    %v1144 = vpack.c.b16 %v1070, %v1068
    %v1145 = vpack.c.b16 %v1073, %v1071
    %v1146 = vpack.c.b16 %v1074, %v1072
    %v1147 = vpack.c.b16 %v1077, %v1075
    %v1148 = vpack.c.b16 %v1078, %v1076
    %v1149 = vpack.c.b16 %v1081, %v1079
    %v1150 = vpack.c.b16 %v1082, %v1080
    %v1151 = vpack.c.b16 %v1085, %v1083
    %v1152 = vpack.c.b16 %v1086, %v1084
    %v1153 = vpack.c.b16 %v1089, %v1087
    %v1154 = vpack.c.b16 %v1090, %v1088
    %1219 = vmatpush.bf16.msra.mxu0 %v1105
    %1220 = vmatpush.bf16.msra.mxu0 %v1103
    %1221 = vmatpush.bf16.msra.mxu0 %v1101
    %1222 = vmatpush.bf16.msra.mxu0 %v1099
    %1223 = vmatpush.bf16.msra.mxu0 %v1097
    %1224 = vmatpush.bf16.msra.mxu0 %v1095
    %1225 = vmatpush.bf16.msra.mxu0 %v1093
    %1226 = vmatpush.bf16.msra.mxu0 %v1091
    %1227 = vmatmul.bf16.gmra.mxu0 %v826
    %v1228 = vpop.f32.mrf.mxu0
    %v1229 = vadd.f32 %v895, %v1228
    %v1230 = vpop.f32.mrf.mxu0
    %1231 = vdwg.mxu0
    %1232 = vmatpush.bf16.msra.mxu0 %v1121
    %1233 = vmatpush.bf16.msra.mxu0 %v1119
    %1234 = vmatpush.bf16.msra.mxu0 %v1117
    %1235 = vmatpush.bf16.msra.mxu0 %v1115
    %1236 = vmatpush.bf16.msra.mxu0 %v1113
    %1237 = vmatpush.bf16.msra.mxu0 %v1111
    %1238 = vmatpush.bf16.msra.mxu0 %v1109
    %1239 = vmatpush.bf16.msra.mxu0 %v1107
    %1240 = vmatmul.bf16.gmra.mxu0 %v827
    %v1241 = vpop.f32.mrf.mxu0
    %v1242 = vadd.f32 %v1229, %v1241
    %v1243 = vpop.f32.mrf.mxu0
    %1244 = vdwg.mxu0
    %1245 = vmatpush.bf16.msra.mxu0 %v1137
    %1246 = vmatpush.bf16.msra.mxu0 %v1135
    %1247 = vmatpush.bf16.msra.mxu0 %v1133
    %1248 = vmatpush.bf16.msra.mxu0 %v1131
    %1249 = vmatpush.bf16.msra.mxu0 %v1129
    %1250 = vmatpush.bf16.msra.mxu0 %v1127
    %1251 = vmatpush.bf16.msra.mxu0 %v1125
    %1252 = vmatpush.bf16.msra.mxu0 %v1123
    %1253 = vmatmul.bf16.gmra.mxu0 %v828
    %v1254 = vpop.f32.mrf.mxu0
    %v1255 = vadd.f32 %v1242, %v1254
    %v1256 = vpop.f32.mrf.mxu0
    %1257 = vdwg.mxu0
    %1258 = vmatpush.bf16.msra.mxu0 %v1153
    %1259 = vmatpush.bf16.msra.mxu0 %v1151
    %1260 = vmatpush.bf16.msra.mxu0 %v1149
    %1261 = vmatpush.bf16.msra.mxu0 %v1147
    %1262 = vmatpush.bf16.msra.mxu0 %v1145
    %1263 = vmatpush.bf16.msra.mxu0 %v1143
    %1264 = vmatpush.bf16.msra.mxu0 %v1141
    %1265 = vmatpush.bf16.msra.mxu0 %v1139
    %1266 = vmatmul.bf16.gmra.mxu0 %v829
    %v1267 = vpop.f32.mrf.mxu0
    %v1268 = vadd.f32 %v1255, %v1267
    %v1269 = vpop.f32.mrf.mxu0
    %1270 = vdwg.mxu0
    %1271 = vmatpush.bf16.msra.mxu0 %v1106
    %1272 = vmatpush.bf16.msra.mxu0 %v1104
    %1273 = vmatpush.bf16.msra.mxu0 %v1102
    %1274 = vmatpush.bf16.msra.mxu0 %v1100
    %1275 = vmatpush.bf16.msra.mxu0 %v1098
    %1276 = vmatpush.bf16.msra.mxu0 %v1096
    %1277 = vmatpush.bf16.msra.mxu0 %v1094
    %1278 = vmatpush.bf16.msra.mxu0 %v1092
    %1279 = vmatmul.bf16.gmra.mxu0 %v826
    %v1280 = vpop.f32.mrf.mxu0
    %v1281 = vadd.f32 %v896, %v1280
    %v1282 = vpop.f32.mrf.mxu0
    %1283 = vdwg.mxu0
    %1284 = vmatpush.bf16.msra.mxu0 %v1122
    %1285 = vmatpush.bf16.msra.mxu0 %v1120
    %1286 = vmatpush.bf16.msra.mxu0 %v1118
    %1287 = vmatpush.bf16.msra.mxu0 %v1116
    %1288 = vmatpush.bf16.msra.mxu0 %v1114
    %1289 = vmatpush.bf16.msra.mxu0 %v1112
    %1290 = vmatpush.bf16.msra.mxu0 %v1110
    %1291 = vmatpush.bf16.msra.mxu0 %v1108
    %1292 = vmatmul.bf16.gmra.mxu0 %v827
    %v1293 = vpop.f32.mrf.mxu0
    %v1294 = vadd.f32 %v1281, %v1293
    %v1295 = vpop.f32.mrf.mxu0
    %1296 = vdwg.mxu0
    %1297 = vmatpush.bf16.msra.mxu0 %v1138
    %1298 = vmatpush.bf16.msra.mxu0 %v1136
    %1299 = vmatpush.bf16.msra.mxu0 %v1134
    %1300 = vmatpush.bf16.msra.mxu0 %v1132
    %1301 = vmatpush.bf16.msra.mxu0 %v1130
    %1302 = vmatpush.bf16.msra.mxu0 %v1128
    %1303 = vmatpush.bf16.msra.mxu0 %v1126
    %1304 = vmatpush.bf16.msra.mxu0 %v1124
    %1305 = vmatmul.bf16.gmra.mxu0 %v828
    %v1306 = vpop.f32.mrf.mxu0
    %v1307 = vadd.f32 %v1294, %v1306
    %v1308 = vpop.f32.mrf.mxu0
    %1309 = vdwg.mxu0
    %1310 = vmatpush.bf16.msra.mxu0 %v1154
    %1311 = vmatpush.bf16.msra.mxu0 %v1152
    %1312 = vmatpush.bf16.msra.mxu0 %v1150
    %1313 = vmatpush.bf16.msra.mxu0 %v1148
    %1314 = vmatpush.bf16.msra.mxu0 %v1146
    %1315 = vmatpush.bf16.msra.mxu0 %v1144
    %1316 = vmatpush.bf16.msra.mxu0 %v1142
    %1317 = vmatpush.bf16.msra.mxu0 %v1140
    %1318 = vmatmul.bf16.gmra.mxu0 %v829
    %v1319 = vpop.f32.mrf.mxu0
    %v1320 = vadd.f32 %v1307, %v1319
    %v1321 = vpop.f32.mrf.mxu0
    %1322 = vdwg.mxu0
    %v1323 = vmax.f32 %v1268, 0.0
    %v1324 = vmax.f32 %v1320, 0.0
    %v1325 = vpack.c.bf16 %v1323, %v1323
    %v1326 = vpack.c.bf16 %v1324, %v1324
    %v1327 = vld [vmem:[#allocation6] sm:$0xff]
    %v1328 = vld [vmem:[#allocation6 + $0x8] sm:$0xff]
    %v1329 = vld [vmem:[#allocation6 + $0x10] sm:$0xff]
    %v1330 = vld [vmem:[#allocation6 + $0x18] sm:$0xff]
    %v1331 = vld [vmem:[#allocation6 + $0x20] sm:$0xff]
    %v1332 = vld [vmem:[#allocation6 + $0x28] sm:$0xff]
    %v1333 = vld [vmem:[#allocation6 + $0x30] sm:$0xff]
    %v1334 = vld [vmem:[#allocation6 + $0x38] sm:$0xff]
    %v1335 = vld [vmem:[#allocation6 + $0x40] sm:$0xff]
    %v1336 = vld [vmem:[#allocation6 + $0x48] sm:$0xff]
    %v1337 = vld [vmem:[#allocation6 + $0x50] sm:$0xff]
    %v1338 = vld [vmem:[#allocation6 + $0x58] sm:$0xff]
    %v1339 = vld [vmem:[#allocation6 + $0x60] sm:$0xff]
    %v1340 = vld [vmem:[#allocation6 + $0x68] sm:$0xff]
    %v1341 = vld [vmem:[#allocation6 + $0x70] sm:$0xff]
    %v1342 = vld [vmem:[#allocation6 + $0x78] sm:$0xff]
    %v1343 = vld [vmem:[#allocation6 + $0x80] sm:$0xff]
    %v1344 = vld [vmem:[#allocation6 + $0x88] sm:$0xff]
    %v1345 = vld [vmem:[#allocation6 + $0x90] sm:$0xff]
    %v1346 = vld [vmem:[#allocation6 + $0x98] sm:$0xff]
    %v1347 = vld [vmem:[#allocation6 + $0xa0] sm:$0xff]
    %v1348 = vld [vmem:[#allocation6 + $0xa8] sm:$0xff]
    %v1349 = vld [vmem:[#allocation6 + $0xb0] sm:$0xff]
    %v1350 = vld [vmem:[#allocation6 + $0xb8] sm:$0xff]
    %v1351 = vld [vmem:[#allocation6 + $0xc0] sm:$0xff]
    %v1352 = vld [vmem:[#allocation6 + $0xc8] sm:$0xff]
    %v1353 = vld [vmem:[#allocation6 + $0xd0] sm:$0xff]
    %v1354 = vld [vmem:[#allocation6 + $0xd8] sm:$0xff]
    %v1355 = vld [vmem:[#allocation6 + $0xe0] sm:$0xff]
    %v1356 = vld [vmem:[#allocation6 + $0xe8] sm:$0xff]
    %v1357 = vld [vmem:[#allocation6 + $0xf0] sm:$0xff]
    %v1358 = vld [vmem:[#allocation6 + $0xf8] sm:$0xff]
    %v1360 = vperm.slane %v124, 0
    %v1361 = vperm.slane %v124, 1
    %v1396 = vunpack.c.l.b16 %v1327
    %v1397 = vunpack.c.h.b16 %v1327
    %v1398 = vunpack.c.l.b16 %v1328
    %v1399 = vunpack.c.h.b16 %v1328
    %v1400 = vunpack.c.l.b16 %v1329
    %v1401 = vunpack.c.h.b16 %v1329
    %v1402 = vunpack.c.l.b16 %v1330
    %v1403 = vunpack.c.h.b16 %v1330
    %v1404 = vunpack.c.l.b16 %v1331
    %v1405 = vunpack.c.h.b16 %v1331
    %v1406 = vunpack.c.l.b16 %v1332
    %v1407 = vunpack.c.h.b16 %v1332
    %v1408 = vunpack.c.l.b16 %v1333
    %v1409 = vunpack.c.h.b16 %v1333
    %v1410 = vunpack.c.l.b16 %v1334
    %v1411 = vunpack.c.h.b16 %v1334
    %v1412 = vunpack.c.l.b16 %v1335
    %v1413 = vunpack.c.h.b16 %v1335
    %v1414 = vunpack.c.l.b16 %v1336
    %v1415 = vunpack.c.h.b16 %v1336
    %v1416 = vunpack.c.l.b16 %v1337
    %v1417 = vunpack.c.h.b16 %v1337
    %v1418 = vunpack.c.l.b16 %v1338
    %v1419 = vunpack.c.h.b16 %v1338
    %v1420 = vunpack.c.l.b16 %v1339
    %v1421 = vunpack.c.h.b16 %v1339
    %v1422 = vunpack.c.l.b16 %v1340
    %v1423 = vunpack.c.h.b16 %v1340
    %v1424 = vunpack.c.l.b16 %v1341
    %v1425 = vunpack.c.h.b16 %v1341
    %v1426 = vunpack.c.l.b16 %v1342
    %v1427 = vunpack.c.h.b16 %v1342
    %v1428 = vunpack.c.l.b16 %v1343
    %v1429 = vunpack.c.h.b16 %v1343
    %v1430 = vunpack.c.l.b16 %v1344
    %v1431 = vunpack.c.h.b16 %v1344
    %v1432 = vunpack.c.l.b16 %v1345
    %v1433 = vunpack.c.h.b16 %v1345
    %v1434 = vunpack.c.l.b16 %v1346
    %v1435 = vunpack.c.h.b16 %v1346
    %v1436 = vunpack.c.l.b16 %v1347
    %v1437 = vunpack.c.h.b16 %v1347
    %v1438 = vunpack.c.l.b16 %v1348
    %v1439 = vunpack.c.h.b16 %v1348
    %v1440 = vunpack.c.l.b16 %v1349
    %v1441 = vunpack.c.h.b16 %v1349
    %v1442 = vunpack.c.l.b16 %v1350
    %v1443 = vunpack.c.h.b16 %v1350
    %v1444 = vunpack.c.l.b16 %v1351
    %v1445 = vunpack.c.h.b16 %v1351
    %v1446 = vunpack.c.l.b16 %v1352
    %v1447 = vunpack.c.h.b16 %v1352
    %v1448 = vunpack.c.l.b16 %v1353
    %v1449 = vunpack.c.h.b16 %v1353
    %v1450 = vunpack.c.l.b16 %v1354
    %v1451 = vunpack.c.h.b16 %v1354
    %v1452 = vunpack.c.l.b16 %v1355
    %v1453 = vunpack.c.h.b16 %v1355
    %v1454 = vunpack.c.l.b16 %v1356
    %v1455 = vunpack.c.h.b16 %v1356
    %v1456 = vunpack.c.l.b16 %v1357
    %v1457 = vunpack.c.h.b16 %v1357
    %v1458 = vunpack.c.l.b16 %v1358
    %v1459 = vunpack.c.h.b16 %v1358
    %v1460 = vpack.c.b16 %v1398, %v1396
    %v1461 = vpack.c.b16 %v1399, %v1397
    %v1462 = vpack.c.b16 %v1402, %v1400
    %v1463 = vpack.c.b16 %v1403, %v1401
    %v1464 = vpack.c.b16 %v1406, %v1404
    %v1465 = vpack.c.b16 %v1407, %v1405
    %v1466 = vpack.c.b16 %v1410, %v1408
    %v1467 = vpack.c.b16 %v1411, %v1409
    %v1468 = vpack.c.b16 %v1414, %v1412
    %v1469 = vpack.c.b16 %v1415, %v1413
    %v1470 = vpack.c.b16 %v1418, %v1416
    %v1471 = vpack.c.b16 %v1419, %v1417
    %v1472 = vpack.c.b16 %v1422, %v1420
    %v1473 = vpack.c.b16 %v1423, %v1421
    %v1474 = vpack.c.b16 %v1426, %v1424
    %v1475 = vpack.c.b16 %v1427, %v1425
    %v1476 = vpack.c.b16 %v1430, %v1428
    %v1477 = vpack.c.b16 %v1431, %v1429
    %v1478 = vpack.c.b16 %v1434, %v1432
    %v1479 = vpack.c.b16 %v1435, %v1433
    %v1480 = vpack.c.b16 %v1438, %v1436
    %v1481 = vpack.c.b16 %v1439, %v1437
    %v1482 = vpack.c.b16 %v1442, %v1440
    %v1483 = vpack.c.b16 %v1443, %v1441
    %v1484 = vpack.c.b16 %v1446, %v1444
    %v1485 = vpack.c.b16 %v1447, %v1445
    %v1486 = vpack.c.b16 %v1450, %v1448
    %v1487 = vpack.c.b16 %v1451, %v1449
    %v1488 = vpack.c.b16 %v1454, %v1452
    %v1489 = vpack.c.b16 %v1455, %v1453
    %v1490 = vpack.c.b16 %v1458, %v1456
    %v1491 = vpack.c.b16 %v1459, %v1457
    %1524 = vmatpush.bf16.msra.mxu0 %v1474
    %1525 = vmatpush.bf16.msra.mxu0 %v1472
    %1526 = vmatpush.bf16.msra.mxu0 %v1470
    %1527 = vmatpush.bf16.msra.mxu0 %v1468
    %1528 = vmatpush.bf16.msra.mxu0 %v1466
    %1529 = vmatpush.bf16.msra.mxu0 %v1464
    %1530 = vmatpush.bf16.msra.mxu0 %v1462
    %1531 = vmatpush.bf16.msra.mxu0 %v1460
    %1532 = vmatmul.bf16.gmra.mxu0 %v1325
    %v1533 = vpop.f32.mrf.mxu0
    %v1534 = vadd.f32 %v1360, %v1533
    %v1535 = vpop.f32.mrf.mxu0
    %1536 = vdwg.mxu0
    %1537 = vmatpush.bf16.msra.mxu0 %v1490
    %1538 = vmatpush.bf16.msra.mxu0 %v1488
    %1539 = vmatpush.bf16.msra.mxu0 %v1486
    %1540 = vmatpush.bf16.msra.mxu0 %v1484
    %1541 = vmatpush.bf16.msra.mxu0 %v1482
    %1542 = vmatpush.bf16.msra.mxu0 %v1480
    %1543 = vmatpush.bf16.msra.mxu0 %v1478
    %1544 = vmatpush.bf16.msra.mxu0 %v1476
    %1545 = vmatmul.bf16.gmra.mxu0 %v1326
    %v1546 = vpop.f32.mrf.mxu0
    %v1547 = vadd.f32 %v1534, %v1546
    %v1548 = vpop.f32.mrf.mxu0
    %1549 = vdwg.mxu0
    %1550 = vmatpush.bf16.msra.mxu0 %v1475
    %1551 = vmatpush.bf16.msra.mxu0 %v1473
    %1552 = vmatpush.bf16.msra.mxu0 %v1471
    %1553 = vmatpush.bf16.msra.mxu0 %v1469
    %1554 = vmatpush.bf16.msra.mxu0 %v1467
    %1555 = vmatpush.bf16.msra.mxu0 %v1465
    %1556 = vmatpush.bf16.msra.mxu0 %v1463
    %1557 = vmatpush.bf16.msra.mxu0 %v1461
    %1558 = vmatmul.bf16.gmra.mxu0 %v1325
    %v1559 = vpop.f32.mrf.mxu0
    %v1560 = vadd.f32 %v1361, %v1559
    %v1561 = vpop.f32.mrf.mxu0
    %1562 = vdwg.mxu0
    %1563 = vmatpush.bf16.msra.mxu0 %v1491
    %1564 = vmatpush.bf16.msra.mxu0 %v1489
    %1565 = vmatpush.bf16.msra.mxu0 %v1487
    %1566 = vmatpush.bf16.msra.mxu0 %v1485
    %1567 = vmatpush.bf16.msra.mxu0 %v1483
    %1568 = vmatpush.bf16.msra.mxu0 %v1481
    %1569 = vmatpush.bf16.msra.mxu0 %v1479
    %1570 = vmatpush.bf16.msra.mxu0 %v1477
    %1571 = vmatmul.bf16.gmra.mxu0 %v1326
    %v1572 = vpop.f32.mrf.mxu0
    %v1573 = vadd.f32 %v1560, %v1572
    %v1574 = vpop.f32.mrf.mxu0
    %1575 = vdwg.mxu0
    %v1576 = vmax.f32 %v1547, 0.0
    %v1577 = vmax.f32 %v1573, 0.0
    %v1578 = vpack.c.bf16 %v1576, %v1576
    %v1579 = vpack.c.bf16 %v1577, %v1577
    %v1580 = vld [vmem:[%s7] sm:$0xf]
    %v1581 = vld [vmem:[%s7 + $0x4] sm:$0xf]
    %v1582 = vld [vmem:[%s7 + $0x8] sm:$0xf]
    %v1583 = vld [vmem:[%s7 + $0xc] sm:$0xf]
    %v1584 = vld [vmem:[%s7 + $0x10] sm:$0xf]
    %v1585 = vld [vmem:[%s7 + $0x14] sm:$0xf]
    %v1586 = vld [vmem:[%s7 + $0x18] sm:$0xf]
    %v1587 = vld [vmem:[%s7 + $0x1c] sm:$0xf]
    %v1588 = vld [vmem:[%s7 + $0x20] sm:$0xf]
    %v1589 = vld [vmem:[%s7 + $0x24] sm:$0xf]
    %v1590 = vld [vmem:[%s7 + $0x28] sm:$0xf]
    %v1591 = vld [vmem:[%s7 + $0x2c] sm:$0xf]
    %v1592 = vld [vmem:[%s7 + $0x30] sm:$0xf]
    %v1593 = vld [vmem:[%s7 + $0x34] sm:$0xf]
    %v1594 = vld [vmem:[%s7 + $0x38] sm:$0xf]
    %v1595 = vld [vmem:[%s7 + $0x3c] sm:$0xf]
    %v1596 = vld [vmem:[%s7 + $0x40] sm:$0xf]
    %v1597 = vld [vmem:[%s7 + $0x44] sm:$0xf]
    %v1598 = vld [vmem:[%s7 + $0x48] sm:$0xf]
    %v1599 = vld [vmem:[%s7 + $0x4c] sm:$0xf]
    %v1600 = vld [vmem:[%s7 + $0x50] sm:$0xf]
    %v1601 = vld [vmem:[%s7 + $0x54] sm:$0xf]
    %v1602 = vld [vmem:[%s7 + $0x58] sm:$0xf]
    %v1603 = vld [vmem:[%s7 + $0x5c] sm:$0xf]
    %v1604 = vld [vmem:[%s7 + $0x60] sm:$0xf]
    %v1605 = vld [vmem:[%s7 + $0x64] sm:$0xf]
    %v1606 = vld [vmem:[%s7 + $0x68] sm:$0xf]
    %v1607 = vld [vmem:[%s7 + $0x6c] sm:$0xf]
    %v1608 = vld [vmem:[%s7 + $0x70] sm:$0xf]
    %v1609 = vld [vmem:[%s7 + $0x74] sm:$0xf]
    %v1610 = vld [vmem:[%s7 + $0x78] sm:$0xf]
    %v1611 = vld [vmem:[%s7 + $0x7c] sm:$0xf]
    %v1613 = vperm.slane %v125, 0
    %v1647 = vunpack.c.l.b16 %v1580
    %v1648 = vunpack.c.l.b16 %v1581
    %v1649 = vunpack.c.l.b16 %v1582
    %v1650 = vunpack.c.l.b16 %v1583
    %v1651 = vunpack.c.l.b16 %v1584
    %v1652 = vunpack.c.l.b16 %v1585
    %v1653 = vunpack.c.l.b16 %v1586
    %v1654 = vunpack.c.l.b16 %v1587
    %v1655 = vunpack.c.l.b16 %v1588
    %v1656 = vunpack.c.l.b16 %v1589
    %v1657 = vunpack.c.l.b16 %v1590
    %v1658 = vunpack.c.l.b16 %v1591
    %v1659 = vunpack.c.l.b16 %v1592
    %v1660 = vunpack.c.l.b16 %v1593
    %v1661 = vunpack.c.l.b16 %v1594
    %v1662 = vunpack.c.l.b16 %v1595
    %v1663 = vunpack.c.l.b16 %v1596
    %v1664 = vunpack.c.l.b16 %v1597
    %v1665 = vunpack.c.l.b16 %v1598
    %v1666 = vunpack.c.l.b16 %v1599
    %v1667 = vunpack.c.l.b16 %v1600
    %v1668 = vunpack.c.l.b16 %v1601
    %v1669 = vunpack.c.l.b16 %v1602
    %v1670 = vunpack.c.l.b16 %v1603
    %v1671 = vunpack.c.l.b16 %v1604
    %v1672 = vunpack.c.l.b16 %v1605
    %v1673 = vunpack.c.l.b16 %v1606
    %v1674 = vunpack.c.l.b16 %v1607
    %v1675 = vunpack.c.l.b16 %v1608
    %v1676 = vunpack.c.l.b16 %v1609
    %v1677 = vunpack.c.l.b16 %v1610
    %v1678 = vunpack.c.l.b16 %v1611
    %v1679 = vpack.c.b16 %v1648, %v1647
    %v1680 = vpack.c.b16 %v1650, %v1649
    %v1681 = vpack.c.b16 %v1652, %v1651
    %v1682 = vpack.c.b16 %v1654, %v1653
    %v1683 = vpack.c.b16 %v1656, %v1655
    %v1684 = vpack.c.b16 %v1658, %v1657
    %v1685 = vpack.c.b16 %v1660, %v1659
    %v1686 = vpack.c.b16 %v1662, %v1661
    %v1687 = vpack.c.b16 %v1664, %v1663
    %v1688 = vpack.c.b16 %v1666, %v1665
    %v1689 = vpack.c.b16 %v1668, %v1667
    %v1690 = vpack.c.b16 %v1670, %v1669
    %v1691 = vpack.c.b16 %v1672, %v1671
    %v1692 = vpack.c.b16 %v1674, %v1673
    %v1693 = vpack.c.b16 %v1676, %v1675
    %v1694 = vpack.c.b16 %v1678, %v1677
    %1711 = vmatpush.bf16.msra.mxu0 %v1686
    %1712 = vmatpush.bf16.msra.mxu0 %v1685
    %1713 = vmatpush.bf16.msra.mxu0 %v1684
    %1714 = vmatpush.bf16.msra.mxu0 %v1683
    %1715 = vmatpush.bf16.msra.mxu0 %v1682
    %1716 = vmatpush.bf16.msra.mxu0 %v1681
    %1717 = vmatpush.bf16.msra.mxu0 %v1680
    %1718 = vmatpush.bf16.msra.mxu0 %v1679
    %1719 = vmatmul.bf16.gmra.mxu0 %v1578
    %v1720 = vpop.f32.mrf.mxu0
    %v1721 = vadd.f32 %v1613, %v1720
    %v1722 = vpop.f32.mrf.mxu0
    %1723 = vdwg.mxu0
    %1724 = vmatpush.bf16.msra.mxu0 %v1694
    %1725 = vmatpush.bf16.msra.mxu0 %v1693
    %1726 = vmatpush.bf16.msra.mxu0 %v1692
    %1727 = vmatpush.bf16.msra.mxu0 %v1691
    %1728 = vmatpush.bf16.msra.mxu0 %v1690
    %1729 = vmatpush.bf16.msra.mxu0 %v1689
    %1730 = vmatpush.bf16.msra.mxu0 %v1688
    %1731 = vmatpush.bf16.msra.mxu0 %v1687
    %1732 = vmatmul.bf16.gmra.mxu0 %v1579
    %v1733 = vpop.f32.mrf.mxu0
    %v1734 = vadd.f32 %v1721, %v1733
    %v1735 = vpop.f32.mrf.mxu0
    %1736 = vdwg.mxu0
    %v1737 = vmax.f32 %v1734, -20.0
    %v1738 = vmin.f32 %v1737, 2.0
    %v1739 = vmul.f32 %v1738, 1.442695
    %v1740 = vpow.pop %v1739
    %vm1741 = vcmask 15360
    %v1742 = vsel %vm1741, %v1734, %v1740
    %vm1743 = vcmask 25600
    %1744 = vst.msk [vmem:[#allocation12] sm:$0x3] %vm1743, %v1742
    %v1745 = vld [vmem:[#allocation8] sm:$0x1]
    %v1746 = vld [vmem:[#allocation9] sm:$0xff]
    %v1747 = vld [vmem:[#allocation9 + $0x8] sm:$0xff]
    %v1749 = vperm.slane %v126, 0
    %v1750 = vperm.slane %v126, 1
    %v1751 = vperm.slane %v126, 2
    %v1754 = vunpack.c.l.b16 %v1746
    %v1755 = vunpack.c.h.b16 %v1746
    %v1756 = vunpack.c.l.b16 %v1747
    %v1757 = vunpack.c.h.b16 %v1747
    %v1758 = vpack.c.b16 %v1756, %v1754
    %v1759 = vpack.c.b16 %v1757, %v1755
    %1762 = vrot.lane.b32.xlu0 %v1749, 124
    %v1763 = vpop.permute.xlu0 %1762
    %1764 = vrot.lane.b32.xlu0 %v1750, 124
    %v1765 = vpop.permute.xlu0 %1764
    %1766 = vrot.lane.b32.xlu0 %v1751, 124
    %v1767 = vpop.permute.xlu0 %1766
    %vm1768 = vcmask 1014784
    %v1769 = vsel %vm1768, %v1763, %v1765
    %v1770 = vsel %vm1768, %v1765, %v1767
    %vm1773 = vcmask 130048
    %v1775 = vsel %vm1773, %v1745, 0
    %1777 = vmatpush.bf16.msra.mxu0 0
    %1778 = vmatpush.bf16.msra.mxu0 0
    %1779 = vmatpush.bf16.msra.mxu0 0
    %1780 = vmatpush.bf16.msra.mxu0 0
    %1781 = vmatpush.bf16.msra.mxu0 0
    %1782 = vmatpush.bf16.msra.mxu0 0
    %1783 = vmatpush.bf16.msra.mxu0 0
    %1784 = vmatpush.bf16.msra.mxu0 %v1758
    %1785 = vmatmul.bf16.gmra.mxu0 %v1775
    %v1786 = vpop.f32.mrf.mxu0
    %v1787 = vadd.f32 %v1769, %v1786
    %v1788 = vpop.f32.mrf.mxu0
    %1789 = vdwg.mxu0
    %1790 = vmatpush.bf16.msra.mxu0 0
    %1791 = vmatpush.bf16.msra.mxu0 0
    %1792 = vmatpush.bf16.msra.mxu0 0
    %1793 = vmatpush.bf16.msra.mxu0 0
    %1794 = vmatpush.bf16.msra.mxu0 0
    %1795 = vmatpush.bf16.msra.mxu0 0
    %1796 = vmatpush.bf16.msra.mxu0 0
    %1797 = vmatpush.bf16.msra.mxu0 %v1759
    %1798 = vmatmul.bf16.gmra.mxu0 %v1775
    %v1799 = vpop.f32.mrf.mxu0
    %v1800 = vadd.f32 %v1770, %v1799
    %v1801 = vpop.f32.mrf.mxu0
    %1802 = vdwg.mxu0
    %v1803 = vmax.f32 %v1787, 0.0
    %v1804 = vmax.f32 %v1800, 0.0
    %v1805 = vpack.c.bf16 %v1803, %v1803
    %v1806 = vpack.c.bf16 %v1804, %v1804
    %v1807 = vld [vmem:[#allocation11] sm:$0xff]
    %v1808 = vld [vmem:[#allocation11 + $0x8] sm:$0xff]
    %v1809 = vld [vmem:[#allocation11 + $0x10] sm:$0xff]
    %v1810 = vld [vmem:[#allocation11 + $0x18] sm:$0xff]
    %v1811 = vld [vmem:[#allocation11 + $0x20] sm:$0xff]
    %v1812 = vld [vmem:[#allocation11 + $0x28] sm:$0xff]
    %v1813 = vld [vmem:[#allocation11 + $0x30] sm:$0xff]
    %v1814 = vld [vmem:[#allocation11 + $0x38] sm:$0xff]
    %v1815 = vld [vmem:[#allocation11 + $0x40] sm:$0xff]
    %v1816 = vld [vmem:[#allocation11 + $0x48] sm:$0xff]
    %v1817 = vld [vmem:[#allocation11 + $0x50] sm:$0xff]
    %v1818 = vld [vmem:[#allocation11 + $0x58] sm:$0xff]
    %v1819 = vld [vmem:[#allocation11 + $0x60] sm:$0xff]
    %v1820 = vld [vmem:[#allocation11 + $0x68] sm:$0xff]
    %v1821 = vld [vmem:[#allocation11 + $0x70] sm:$0xff]
    %v1822 = vld [vmem:[#allocation11 + $0x78] sm:$0xff]
    %v1823 = vld [vmem:[#allocation11 + $0x80] sm:$0xff]
    %v1824 = vld [vmem:[#allocation11 + $0x88] sm:$0xff]
    %v1825 = vld [vmem:[#allocation11 + $0x90] sm:$0xff]
    %v1826 = vld [vmem:[#allocation11 + $0x98] sm:$0xff]
    %v1827 = vld [vmem:[#allocation11 + $0xa0] sm:$0xff]
    %v1828 = vld [vmem:[#allocation11 + $0xa8] sm:$0xff]
    %v1829 = vld [vmem:[#allocation11 + $0xb0] sm:$0xff]
    %v1830 = vld [vmem:[#allocation11 + $0xb8] sm:$0xff]
    %v1831 = vld [vmem:[#allocation11 + $0xc0] sm:$0xff]
    %v1832 = vld [vmem:[#allocation11 + $0xc8] sm:$0xff]
    %v1833 = vld [vmem:[#allocation11 + $0xd0] sm:$0xff]
    %v1834 = vld [vmem:[#allocation11 + $0xd8] sm:$0xff]
    %v1835 = vld [vmem:[#allocation11 + $0xe0] sm:$0xff]
    %v1836 = vld [vmem:[#allocation11 + $0xe8] sm:$0xff]
    %v1837 = vld [vmem:[#allocation11 + $0xf0] sm:$0xff]
    %v1838 = vld [vmem:[#allocation11 + $0xf8] sm:$0xff]
    %v1840 = vperm.slane %v127, 0
    %v1841 = vperm.slane %v127, 1
    %v1842 = vperm.slane %v127, 2
    %v1875 = vunpack.c.l.b16 %v1807
    %v1876 = vunpack.c.h.b16 %v1807
    %v1877 = vunpack.c.l.b16 %v1808
    %v1878 = vunpack.c.h.b16 %v1808
    %v1879 = vunpack.c.l.b16 %v1809
    %v1880 = vunpack.c.h.b16 %v1809
    %v1881 = vunpack.c.l.b16 %v1810
    %v1882 = vunpack.c.h.b16 %v1810
    %v1883 = vunpack.c.l.b16 %v1811
    %v1884 = vunpack.c.h.b16 %v1811
    %v1885 = vunpack.c.l.b16 %v1812
    %v1886 = vunpack.c.h.b16 %v1812
    %v1887 = vunpack.c.l.b16 %v1813
    %v1888 = vunpack.c.h.b16 %v1813
    %v1889 = vunpack.c.l.b16 %v1814
    %v1890 = vunpack.c.h.b16 %v1814
    %v1891 = vunpack.c.l.b16 %v1815
    %v1892 = vunpack.c.h.b16 %v1815
    %v1893 = vunpack.c.l.b16 %v1816
    %v1894 = vunpack.c.h.b16 %v1816
    %v1895 = vunpack.c.l.b16 %v1817
    %v1896 = vunpack.c.h.b16 %v1817
    %v1897 = vunpack.c.l.b16 %v1818
    %v1898 = vunpack.c.h.b16 %v1818
    %v1899 = vunpack.c.l.b16 %v1819
    %v1900 = vunpack.c.h.b16 %v1819
    %v1901 = vunpack.c.l.b16 %v1820
    %v1902 = vunpack.c.h.b16 %v1820
    %v1903 = vunpack.c.l.b16 %v1821
    %v1904 = vunpack.c.h.b16 %v1821
    %v1905 = vunpack.c.l.b16 %v1822
    %v1906 = vunpack.c.h.b16 %v1822
    %v1907 = vunpack.c.l.b16 %v1823
    %v1908 = vunpack.c.h.b16 %v1823
    %v1909 = vunpack.c.l.b16 %v1824
    %v1910 = vunpack.c.h.b16 %v1824
    %v1911 = vunpack.c.l.b16 %v1825
    %v1912 = vunpack.c.h.b16 %v1825
    %v1913 = vunpack.c.l.b16 %v1826
    %v1914 = vunpack.c.h.b16 %v1826
    %v1915 = vunpack.c.l.b16 %v1827
    %v1916 = vunpack.c.h.b16 %v1827
    %v1917 = vunpack.c.l.b16 %v1828
    %v1918 = vunpack.c.h.b16 %v1828
    %v1919 = vunpack.c.l.b16 %v1829
    %v1920 = vunpack.c.h.b16 %v1829
    %v1921 = vunpack.c.l.b16 %v1830
    %v1922 = vunpack.c.h.b16 %v1830
    %v1923 = vunpack.c.l.b16 %v1831
    %v1924 = vunpack.c.h.b16 %v1831
    %v1925 = vunpack.c.l.b16 %v1832
    %v1926 = vunpack.c.h.b16 %v1832
    %v1927 = vunpack.c.l.b16 %v1833
    %v1928 = vunpack.c.h.b16 %v1833
    %v1929 = vunpack.c.l.b16 %v1834
    %v1930 = vunpack.c.h.b16 %v1834
    %v1931 = vunpack.c.l.b16 %v1835
    %v1932 = vunpack.c.h.b16 %v1835
    %v1933 = vunpack.c.l.b16 %v1836
    %v1934 = vunpack.c.h.b16 %v1836
    %v1935 = vunpack.c.l.b16 %v1837
    %v1936 = vunpack.c.h.b16 %v1837
    %v1937 = vunpack.c.l.b16 %v1838
    %v1938 = vunpack.c.h.b16 %v1838
    %v1939 = vpack.c.b16 %v1877, %v1875
    %v1940 = vpack.c.b16 %v1878, %v1876
    %v1941 = vpack.c.b16 %v1881, %v1879
    %v1942 = vpack.c.b16 %v1882, %v1880
    %v1943 = vpack.c.b16 %v1885, %v1883
    %v1944 = vpack.c.b16 %v1886, %v1884
    %v1945 = vpack.c.b16 %v1889, %v1887
    %v1946 = vpack.c.b16 %v1890, %v1888
    %v1947 = vpack.c.b16 %v1893, %v1891
    %v1948 = vpack.c.b16 %v1894, %v1892
    %v1949 = vpack.c.b16 %v1897, %v1895
    %v1950 = vpack.c.b16 %v1898, %v1896
    %v1951 = vpack.c.b16 %v1901, %v1899
    %v1952 = vpack.c.b16 %v1902, %v1900
    %v1953 = vpack.c.b16 %v1905, %v1903
    %v1954 = vpack.c.b16 %v1906, %v1904
    %v1955 = vpack.c.b16 %v1909, %v1907
    %v1956 = vpack.c.b16 %v1910, %v1908
    %v1957 = vpack.c.b16 %v1913, %v1911
    %v1958 = vpack.c.b16 %v1914, %v1912
    %v1959 = vpack.c.b16 %v1917, %v1915
    %v1960 = vpack.c.b16 %v1918, %v1916
    %v1961 = vpack.c.b16 %v1921, %v1919
    %v1962 = vpack.c.b16 %v1922, %v1920
    %v1963 = vpack.c.b16 %v1925, %v1923
    %v1964 = vpack.c.b16 %v1926, %v1924
    %v1965 = vpack.c.b16 %v1929, %v1927
    %v1966 = vpack.c.b16 %v1930, %v1928
    %v1967 = vpack.c.b16 %v1933, %v1931
    %v1968 = vpack.c.b16 %v1934, %v1932
    %v1969 = vpack.c.b16 %v1937, %v1935
    %v1970 = vpack.c.b16 %v1938, %v1936
    %2003 = vrot.lane.b32.xlu0 %v1840, 124
    %v2004 = vpop.permute.xlu0 %2003
    %2005 = vrot.lane.b32.xlu0 %v1841, 124
    %v2006 = vpop.permute.xlu0 %2005
    %2007 = vrot.lane.b32.xlu0 %v1842, 124
    %v2008 = vpop.permute.xlu0 %2007
    %v2009 = vsel %vm1768, %v2004, %v2006
    %v2010 = vsel %vm1768, %v2006, %v2008
    %2013 = vmatpush.bf16.msra.mxu0 %v1953
    %2014 = vmatpush.bf16.msra.mxu0 %v1951
    %2015 = vmatpush.bf16.msra.mxu0 %v1949
    %2016 = vmatpush.bf16.msra.mxu0 %v1947
    %2017 = vmatpush.bf16.msra.mxu0 %v1945
    %2018 = vmatpush.bf16.msra.mxu0 %v1943
    %2019 = vmatpush.bf16.msra.mxu0 %v1941
    %2020 = vmatpush.bf16.msra.mxu0 %v1939
    %2021 = vmatmul.bf16.gmra.mxu0 %v1805
    %v2022 = vpop.f32.mrf.mxu0
    %v2023 = vadd.f32 %v2009, %v2022
    %v2024 = vpop.f32.mrf.mxu0
    %2025 = vdwg.mxu0
    %2026 = vmatpush.bf16.msra.mxu0 %v1969
    %2027 = vmatpush.bf16.msra.mxu0 %v1967
    %2028 = vmatpush.bf16.msra.mxu0 %v1965
    %2029 = vmatpush.bf16.msra.mxu0 %v1963
    %2030 = vmatpush.bf16.msra.mxu0 %v1961
    %2031 = vmatpush.bf16.msra.mxu0 %v1959
    %2032 = vmatpush.bf16.msra.mxu0 %v1957
    %2033 = vmatpush.bf16.msra.mxu0 %v1955
    %2034 = vmatmul.bf16.gmra.mxu0 %v1806
    %v2035 = vpop.f32.mrf.mxu0
    %v2036 = vadd.f32 %v2023, %v2035
    %v2037 = vpop.f32.mrf.mxu0
    %2038 = vdwg.mxu0
    %2039 = vmatpush.bf16.msra.mxu0 %v1954
    %2040 = vmatpush.bf16.msra.mxu0 %v1952
    %2041 = vmatpush.bf16.msra.mxu0 %v1950
    %2042 = vmatpush.bf16.msra.mxu0 %v1948
    %2043 = vmatpush.bf16.msra.mxu0 %v1946
    %2044 = vmatpush.bf16.msra.mxu0 %v1944
    %2045 = vmatpush.bf16.msra.mxu0 %v1942
    %2046 = vmatpush.bf16.msra.mxu0 %v1940
    %2047 = vmatmul.bf16.gmra.mxu0 %v1805
    %v2048 = vpop.f32.mrf.mxu0
    %v2049 = vadd.f32 %v2010, %v2048
    %v2050 = vpop.f32.mrf.mxu0
    %2051 = vdwg.mxu0
    %2052 = vmatpush.bf16.msra.mxu0 %v1970
    %2053 = vmatpush.bf16.msra.mxu0 %v1968
    %2054 = vmatpush.bf16.msra.mxu0 %v1966
    %2055 = vmatpush.bf16.msra.mxu0 %v1964
    %2056 = vmatpush.bf16.msra.mxu0 %v1962
    %2057 = vmatpush.bf16.msra.mxu0 %v1960
    %2058 = vmatpush.bf16.msra.mxu0 %v1958
    %2059 = vmatpush.bf16.msra.mxu0 %v1956
    %2060 = vmatmul.bf16.gmra.mxu0 %v1806
    %v2061 = vpop.f32.mrf.mxu0
    %v2062 = vadd.f32 %v2049, %v2061
    %v2063 = vpop.f32.mrf.mxu0
    %2064 = vdwg.mxu0
    %v2065 = vmax.f32 %v2036, 0.0
    %v2066 = vmax.f32 %v2062, 0.0
    %v2067 = vpack.c.bf16 %v2065, %v2065
    %v2068 = vpack.c.bf16 %v2066, %v2066
    %v2069 = vld [vmem:[%s11] sm:$0xf]
    %v2070 = vld [vmem:[%s11 + $0x4] sm:$0xf]
    %v2071 = vld [vmem:[%s11 + $0x8] sm:$0xf]
    %v2072 = vld [vmem:[%s11 + $0xc] sm:$0xf]
    %v2073 = vld [vmem:[%s11 + $0x10] sm:$0xf]
    %v2074 = vld [vmem:[%s11 + $0x14] sm:$0xf]
    %v2075 = vld [vmem:[%s11 + $0x18] sm:$0xf]
    %v2076 = vld [vmem:[%s11 + $0x1c] sm:$0xf]
    %v2077 = vld [vmem:[%s11 + $0x20] sm:$0xf]
    %v2078 = vld [vmem:[%s11 + $0x24] sm:$0xf]
    %v2079 = vld [vmem:[%s11 + $0x28] sm:$0xf]
    %v2080 = vld [vmem:[%s11 + $0x2c] sm:$0xf]
    %v2081 = vld [vmem:[%s11 + $0x30] sm:$0xf]
    %v2082 = vld [vmem:[%s11 + $0x34] sm:$0xf]
    %v2083 = vld [vmem:[%s11 + $0x38] sm:$0xf]
    %v2084 = vld [vmem:[%s11 + $0x3c] sm:$0xf]
    %v2085 = vld [vmem:[%s11 + $0x40] sm:$0xf]
    %v2086 = vld [vmem:[%s11 + $0x44] sm:$0xf]
    %v2087 = vld [vmem:[%s11 + $0x48] sm:$0xf]
    %v2088 = vld [vmem:[%s11 + $0x4c] sm:$0xf]
    %v2089 = vld [vmem:[%s11 + $0x50] sm:$0xf]
    %v2090 = vld [vmem:[%s11 + $0x54] sm:$0xf]
    %v2091 = vld [vmem:[%s11 + $0x58] sm:$0xf]
    %v2092 = vld [vmem:[%s11 + $0x5c] sm:$0xf]
    %v2093 = vld [vmem:[%s11 + $0x60] sm:$0xf]
    %v2094 = vld [vmem:[%s11 + $0x64] sm:$0xf]
    %v2095 = vld [vmem:[%s11 + $0x68] sm:$0xf]
    %v2096 = vld [vmem:[%s11 + $0x6c] sm:$0xf]
    %v2097 = vld [vmem:[%s11 + $0x70] sm:$0xf]
    %v2098 = vld [vmem:[%s11 + $0x74] sm:$0xf]
    %v2099 = vld [vmem:[%s11 + $0x78] sm:$0xf]
    %v2100 = vld [vmem:[%s11 + $0x7c] sm:$0xf]
    %v2102 = vperm.slane %v128, 0
    %v2135 = vunpack.c.l.b16 %v2069
    %v2136 = vunpack.c.l.b16 %v2070
    %v2137 = vunpack.c.l.b16 %v2071
    %v2138 = vunpack.c.l.b16 %v2072
    %v2139 = vunpack.c.l.b16 %v2073
    %v2140 = vunpack.c.l.b16 %v2074
    %v2141 = vunpack.c.l.b16 %v2075
    %v2142 = vunpack.c.l.b16 %v2076
    %v2143 = vunpack.c.l.b16 %v2077
    %v2144 = vunpack.c.l.b16 %v2078
    %v2145 = vunpack.c.l.b16 %v2079
    %v2146 = vunpack.c.l.b16 %v2080
    %v2147 = vunpack.c.l.b16 %v2081
    %v2148 = vunpack.c.l.b16 %v2082
    %v2149 = vunpack.c.l.b16 %v2083
    %v2150 = vunpack.c.l.b16 %v2084
    %v2151 = vunpack.c.l.b16 %v2085
    %v2152 = vunpack.c.l.b16 %v2086
    %v2153 = vunpack.c.l.b16 %v2087
    %v2154 = vunpack.c.l.b16 %v2088
    %v2155 = vunpack.c.l.b16 %v2089
    %v2156 = vunpack.c.l.b16 %v2090
    %v2157 = vunpack.c.l.b16 %v2091
    %v2158 = vunpack.c.l.b16 %v2092
    %v2159 = vunpack.c.l.b16 %v2093
    %v2160 = vunpack.c.l.b16 %v2094
    %v2161 = vunpack.c.l.b16 %v2095
    %v2162 = vunpack.c.l.b16 %v2096
    %v2163 = vunpack.c.l.b16 %v2097
    %v2164 = vunpack.c.l.b16 %v2098
    %v2165 = vunpack.c.l.b16 %v2099
    %v2166 = vunpack.c.l.b16 %v2100
    %v2167 = vpack.c.b16 %v2136, %v2135
    %v2168 = vpack.c.b16 %v2138, %v2137
    %v2169 = vpack.c.b16 %v2140, %v2139
    %v2170 = vpack.c.b16 %v2142, %v2141
    %v2171 = vpack.c.b16 %v2144, %v2143
    %v2172 = vpack.c.b16 %v2146, %v2145
    %v2173 = vpack.c.b16 %v2148, %v2147
    %v2174 = vpack.c.b16 %v2150, %v2149
    %v2175 = vpack.c.b16 %v2152, %v2151
    %v2176 = vpack.c.b16 %v2154, %v2153
    %v2177 = vpack.c.b16 %v2156, %v2155
    %v2178 = vpack.c.b16 %v2158, %v2157
    %v2179 = vpack.c.b16 %v2160, %v2159
    %v2180 = vpack.c.b16 %v2162, %v2161
    %v2181 = vpack.c.b16 %v2164, %v2163
    %v2182 = vpack.c.b16 %v2166, %v2165
    %2199 = vrot.lane.b32.xlu0 %v2102, 124
    %v2200 = vpop.permute.xlu0 %2199
    %2202 = vmatpush.bf16.msra.mxu0 %v2174
    %2203 = vmatpush.bf16.msra.mxu0 %v2173
    %2204 = vmatpush.bf16.msra.mxu0 %v2172
    %2205 = vmatpush.bf16.msra.mxu0 %v2171
    %2206 = vmatpush.bf16.msra.mxu0 %v2170
    %2207 = vmatpush.bf16.msra.mxu0 %v2169
    %2208 = vmatpush.bf16.msra.mxu0 %v2168
    %2209 = vmatpush.bf16.msra.mxu0 %v2167
    %2210 = vmatmul.bf16.gmra.mxu0 %v2067
    %v2211 = vpop.f32.mrf.mxu0
    %v2212 = vadd.f32 %v2200, %v2211
    %v2213 = vpop.f32.mrf.mxu0
    %2214 = vdwg.mxu0
    %2215 = vmatpush.bf16.msra.mxu0 %v2182
    %2216 = vmatpush.bf16.msra.mxu0 %v2181
    %2217 = vmatpush.bf16.msra.mxu0 %v2180
    %2218 = vmatpush.bf16.msra.mxu0 %v2179
    %2219 = vmatpush.bf16.msra.mxu0 %v2178
    %2220 = vmatpush.bf16.msra.mxu0 %v2177
    %2221 = vmatpush.bf16.msra.mxu0 %v2176
    %2222 = vmatpush.bf16.msra.mxu0 %v2175
    %2223 = vmatmul.bf16.gmra.mxu0 %v2068
    %v2224 = vpop.f32.mrf.mxu0
    %v2225 = vadd.f32 %v2212, %v2224
    %v2226 = vpop.f32.mrf.mxu0
    %2227 = vdwg.mxu0
    %vm2228 = vcmask 1024
    %2229 = vst.msk [vmem:[%s14] sm:$0x3] %vm2228, %v2225
    // Predicated region
    $region74: #{tpu_custom_call.1} parent=1 // pred_check
      _
    $region75: #{tpu_custom_call.1} parent=1 // pred_check_branch
      %2231 = sbr.rel (0) target = $region77
    $region76: #{tpu_custom_call.1} parent=1 // pred_region
      %2233 = vsyncadd [#allocation5], 0
      %s2235 = sshll.u32 [#allocation12], 4
      %s2236 = int_to_ptr.vmem [resolvable:$true] %s2235
      %s2237 = sshll.u32 %s13, 4
      %s2238 = int_to_ptr.hbm [resolvable:$true] %s2237
      %2240 = dma.vmem_to_hbm [thread:$0]  %s2236, 32, %s2238, [#allocation5]
    $region77: #{tpu_custom_call.1} parent=1 // pred_fallthru
      _
    // Predicated region
    $region78: #{tpu_custom_call.1} parent=1 // pred_check
      _
    $region79: #{tpu_custom_call.1} parent=1 // pred_check_branch
      %2242 = sbr.rel (0) target = $region81
    $region80: #{tpu_custom_call.1} parent=1 // pred_region
      _
    $region81: #{tpu_custom_call.1} parent=1 // pred_fallthru
      _
    // Predicated region
    $region82: #{tpu_custom_call.1} parent=1 // pred_check
      _
    $region83: #{tpu_custom_call.1} parent=1 // pred_check_branch
      %2244 = sbr.rel (0) target = $region85
    $region84: #{tpu_custom_call.1} parent=1 // pred_region
      %2246 = dma.done [#allocation5], 32
    $region85: #{tpu_custom_call.1} parent=1 // pred_fallthru
      _
    // Predicated region
    $region86: #{tpu_custom_call.1} parent=1 // pred_check
      _
    $region87: #{tpu_custom_call.1} parent=1 // pred_check_branch
      %2248 = sbr.rel (0) target = $region89
    $region88: #{tpu_custom_call.1} parent=1 // pred_region
      _
    $region89: #{tpu_custom_call.1} parent=1 // pred_fallthru
      _
    %2249 = vsyncpa [#allocation4], 1
    %2250 = vsyncpa [#allocation7], 1
    %2251 = vsyncpa [#allocation10], 1
    %2252 = vsyncpa [#allocation5], 1

</llo_original>
